<compile_context>
chip_gen: v6e
topology: v6e:2x2x1
jax: 0.10.0
libtpu: 0.0.40
codegen_flags: <defaults>
</compile_context>

<pallas_src>
import functools

import numpy as np
import jax
import jax.numpy as jnp
from jax.experimental import pallas as pl
from jax.experimental.pallas import tpu as pltpu

EPS = 1e-5  # nn.BatchNorm2d default eps


def _round_up(v, m):
    return ((v + m - 1) // m) * m


# --------------------------- host-side constants ----------------------------

def _interp_matrix_np(out_size, in_size):
    """1-D bilinear interpolation matrix, align_corners=True (numpy constant)."""
    m = np.zeros((out_size, in_size), np.float32)
    if out_size == 1:
        src = np.zeros((1,), np.float64)
    else:
        src = np.arange(out_size, dtype=np.float64) * (in_size - 1) / (out_size - 1)
    lo = np.clip(np.floor(src).astype(np.int64), 0, in_size - 1)
    hi = np.minimum(lo + 1, in_size - 1)
    frac = (src - lo).astype(np.float32)
    for o in range(out_size):
        m[o, lo[o]] += 1.0 - frac[o]
        m[o, hi[o]] += frac[o]
    return m


def _tap_maps_np(h_in, w_in, h_out, w_out, interpolate):
    """Per-deconv-tap *separable* spatial maps (no dense (Min,Mout) matrix).

    resized_up[.., ho, wo] = sum_t sum_{hi,wi} ay[t][ho,hi] * ax[t][wo,wi] * tap_t[.., hi, wi]
    cov[ho, wo] = total resize weight hitting that pixel (deconv-bias coverage).
    """
    h_up, w_up = 2 * h_in, 2 * w_in
    if interpolate:
        my = _interp_matrix_np(h_out, h_up)          # (h_out, h_up)
        mx = _interp_matrix_np(w_out, w_up)          # (w_out, w_up)
    else:
        diff_y, diff_x = h_out - h_in, w_out - w_in
        pad_t, pad_b = diff_y, diff_y - diff_y // 2          # faithful to reference F.pad args
        pad_l, pad_r = diff_x // 2, diff_x - diff_x // 2
        if min(pad_t, pad_b, pad_l, pad_r) < 0:
            # TODO(synk): negative F.pad (crop) has no clean fold here.
            raise NotImplementedError("negative padding (crop) not supported")
        if (h_up + pad_t + pad_b, w_up + pad_l + pad_r) != (h_out, w_out):
            raise ValueError("interpolate=False pad result does not match x_copy size")
        my = np.zeros((h_out, h_up), np.float32)
        my[np.arange(h_up) + pad_t, np.arange(h_up)] = 1.0
        mx = np.zeros((w_out, w_up), np.float32)
        mx[np.arange(w_up) + pad_l, np.arange(w_up)] = 1.0
    ay = np.stack([my[:, (t // 2)::2] for t in range(4)]).astype(np.float32)  # (4, h_out, h_in)
    ax = np.stack([mx[:, (t % 2)::2] for t in range(4)]).astype(np.float32)   # (4, w_out, w_in)
    cov = np.outer(my.sum(axis=1), mx.sum(axis=1)).astype(np.float32)         # (h_out, w_out)
    return ay, ax, cov


def _conv_slab_np(w, c_rows, c_p):
    """(c_p, 9*c_rows) slab: column s*c_rows + ci holds w[:, ci, s//3, s%3]."""
    co, ci = int(w.shape[0]), int(w.shape[1])
    w = np.asarray(w, np.float32)
    slab = np.zeros((c_p, 9 * c_rows), np.float32)
    for s in range(9):
        slab[:co, s * c_rows:s * c_rows + ci] = w[:, :, s // 3, s % 3]
    return slab


def _col_np(v, c_p):
    out = np.zeros((c_p, 1), np.float32)
    v = np.asarray(v, np.float32)
    out[:v.shape[0], 0] = v
    return out


# ------------------------------ fused kernel --------------------------------

def _decoder_kernel(xc_ref, z_ref, wdec_ref, upb_ref, cov_ref, msk_ref,
                    w1_ref, g1_ref, b1_ref, w2_ref, g2_ref, b2_ref,
                    o_ref, cat_ref, col_ref,
                    *, c_skip, c_cat_p, c_p, w_out, m_out):
    f32 = jnp.float32
    cdt = col_ref.dtype   # matmul operand dtype (f32 or bf16)

    # ---- Stage 1: ConvTranspose2d(k=2,s=2) + resize/pad + in-kernel concat ----
    # z already holds the 4 per-tap scattered/resized copies of x (built from tiny
    # separable maps in the wrapper), so the deconv+resize is ONE matmul:
    # (Ccat_p, 4*Cin) @ (4*Cin, Mout); result rows [c_skip, c_skip+c_out) are `up`.
    up = jnp.dot(wdec_ref[...], z_ref[...], preferred_element_type=f32)
    up = up + upb_ref[...] * cov_ref[...]             # deconv bias * resize coverage
    cat_ref[...] = up
    if c_skip > 0:
        cat_ref[pl.ds(0, c_skip), :] = xc_ref[...]    # skip-connection rows (concat)
    cat = cat_ref[...]

    # Precomputed f32 boundary masks for the 8 non-center 3x3 taps, shared by both convs.
    masks = msk_ref[...]
    edge = [masks[i:i + 1, :] for i in range(8)]

    def conv3x3(a, c_rows, w_ref):
        # Stack the 9 rolled+masked copies into one (9*C, Mout) VMEM slab, then do a
        # single (Cout_p, 9*C) @ (9*C, Mout) MXU matmul (1 push/pop instead of 9).
        mi = 0
        for s in range(9):
            dh, dw = s // 3 - 1, s % 3 - 1
            if dh == 0 and dw == 0:
                src = a
            else:
                src = pltpu.roll(a, (-(dh * w_out + dw)) % m_out, 1) * edge[mi]
                mi += 1
            col_ref[pl.ds(s * c_rows, c_rows), :] = src.astype(cdt)
        return jnp.dot(w_ref[...], col_ref[pl.ds(0, 9 * c_rows), :],
                       preferred_element_type=f32)

    def bn_relu(y, g_ref, b_ref):
        # Training-mode batch stats, shifted two-pass variance, folded gamma/beta.
        inv = 1.0 / m_out
        mean = jnp.sum(y, axis=1, keepdims=True) * inv
        d = y - mean
        var = jnp.sum(d * d, axis=1, keepdims=True) * inv
        return jnp.maximum(d * (g_ref[...] * jax.lax.rsqrt(var + EPS)) + b_ref[...], 0.0)

    # Conv biases omitted: train-mode BN subtracts the batch mean, so they cancel.
    a1 = bn_relu(conv3x3(cat, c_cat_p, w1_ref), g1_ref, b1_ref)
    o_ref[...] = bn_relu(conv3x3(a1, c_p, w2_ref), g2_ref, b2_ref)


# ------------------------------ builder / wrapper -----------------------------

def build_decoder(params, x_copy_shape, x_shape, interpolate=True,
                  compute_dtype=jnp.float32):
    """One-time parameter/layout preprocessing; returns a jitted forward(x_copy, x)."""
    n, c_in, h_in, w_in = map(int, x_shape)
    n2, c_skip, h_out, w_out = map(int, x_copy_shape)
    if n != n2:
        raise ValueError("batch mismatch")
    c_out = int(params["up_w"].shape[1])
    if int(params["up_w"].shape[0]) != c_in:
        raise ValueError("ConvTranspose2d in_channels mismatch")
    c_cat = c_skip + c_out
    if int(params["c1_w"].shape[1]) != c_cat:
        raise ValueError("concat channels must match first conv input channels")

    c_cat_p = _round_up(c_cat, 8)
    c_p = _round_up(c_out, 8)
    m_out = n * h_out * w_out
    cdt = compute_dtype

    # --- one-time host-side (numpy) constants -------------------------------
    ay_np, ax_np, cov_hw = _tap_maps_np(h_in, w_in, h_out, w_out, interpolate)

    up_w = np.asarray(params["up_w"], np.float32)                 # (Cin, Cout, 2, 2)
    wdec_np = np.zeros((c_cat_p, 4 * c_in), np.float32)
    for t in range(4):
        wdec_np[c_skip:c_skip + c_out, t * c_in:(t + 1) * c_in] = up_w[:, :, t // 2, t % 2].T
    upb_np = np.zeros((c_cat_p, 1), np.float32)
    upb_np[c_skip:c_skip + c_out, 0] = np.asarray(params["up_b"], np.float32)

    w1_np = _conv_slab_np(params["c1_w"], c_cat_p, c_p)
    w2_np = _conv_slab_np(params["c2_w"], c_p, c_p)

    p = np.arange(m_out)
    ho = (p // w_out) % h_out
    wo = p % w_out
    masks_np = np.zeros((8, m_out), np.float32)
    mi = 0
    for s in range(9):
        dh, dw = s // 3 - 1, s % 3 - 1
        if dh == 0 and dw == 0:
            continue
        ok = (ho + dh >= 0) & (ho + dh < h_out) & (wo + dw >= 0) & (wo + dw < w_out)
        masks_np[mi] = ok.astype(np.float32)
        mi += 1

    ay = jnp.asarray(ay_np)
    ax = jnp.asarray(ax_np)
    cov = jnp.asarray(np.tile(cov_hw.reshape(-1), n)[None, :])
    wdec = jnp.asarray(wdec_np, cdt)
    upb = jnp.asarray(upb_np)
    w1 = jnp.asarray(w1_np, cdt)
    w2 = jnp.asarray(w2_np, cdt)
    g1 = jnp.asarray(_col_np(params["bn1_g"], c_p))
    b1 = jnp.asarray(_col_np(params["bn1_b"], c_p))
    g2 = jnp.asarray(_col_np(params["bn2_g"], c_p))
    b2 = jnp.asarray(_col_np(params["bn2_b"], c_p))
    masks = jnp.asarray(masks_np)

    kernel = functools.partial(_decoder_kernel, c_skip=c_skip, c_cat_p=c_cat_p,
                               c_p=c_p, w_out=w_out, m_out=m_out)
    vmem = pl.BlockSpec(memory_space=pltpu.MemorySpace.VMEM)
    call = pl.pallas_call(
        kernel,
        out_shape=jax.ShapeDtypeStruct((c_p, m_out), jnp.float32),
        in_specs=[vmem] * 12,
        out_specs=vmem,
        scratch_shapes=[pltpu.VMEM((c_cat_p, m_out), jnp.float32),
                        pltpu.VMEM((9 * c_cat_p, m_out), cdt)],
        compiler_params=pltpu.CompilerParams(vmem_limit_bytes=32 * 1024 * 1024),
    )

    def forward(x_copy, x):
        x = x.astype(jnp.float32)
        x_copy = x_copy.astype(jnp.float32)
        # Per-tap separable deconv scatter + bilinear resize / pad, applied to the
        # input (O(pixels) work/memory; replaces the old dense (Min,Mout) matrix).
        z = jnp.einsum("toh,nchw,tpw->tcnop", ay, x, ax,
                       precision=jax.lax.Precision.HIGHEST)
        z = z.reshape(4 * c_in, m_out).astype(cdt)
        xc = x_copy.transpose(1, 0, 2, 3).reshape(c_skip, m_out)
        out = call(xc, z, wdec, upb, cov, masks, w1, g1, b1, w2, g2, b2)
        return out[:c_out].reshape(c_out, n, h_out, w_out).transpose(1, 0, 2, 3)

    return jax.jit(forward)


# --------------------------- pure-JAX reference ------------------------------

def _reference_forward(params, x_copy, x, interpolate=True):
    hi = jax.lax.Precision.HIGHEST
    n, c_in, h, w = x.shape
    c_out = params["up_w"].shape[1]
    up = jnp.zeros((n, c_out, 2 * h, 2 * w), jnp.float32)
    for kh in range(2):
        for kw in range(2):
            contrib = jnp.einsum("nchw,cd->ndhw", x, params["up_w"][:, :, kh, kw],
                                 precision=hi)
            up = up.at[:, :, kh::2, kw::2].set(contrib)
    up = up + params["up_b"][None, :, None, None]
    h_out, w_out = x_copy.shape[2], x_copy.shape[3]
    if interpolate:
        if (h_out, w_out) == (2 * h, 2 * w):
            out = up
        else:
            my = jnp.asarray(_interp_matrix_np(h_out, 2 * h))
            mx = jnp.asarray(_interp_matrix_np(w_out, 2 * w))
            out = jnp.einsum("oh,nchw,pw->ncop", my, up, mx, precision=hi)
    else:
        dy, dx = h_out - h, w_out - w
        out = jnp.pad(up, ((0, 0), (0, 0), (dy, dy - dy // 2), (dx // 2, dx - dx // 2)))
    out = jnp.concatenate([x_copy, out], axis=1)

    def conv_bn_relu(z, wgt, b, g, beta):
        y = jax.lax.conv_general_dilated(
            z, wgt, window_strides=(1, 1), padding=((1, 1), (1, 1)),
            dimension_numbers=("NCHW", "OIHW", "NCHW"), precision=hi)
        y = y + b[None, :, None, None]
        mean = jnp.mean(y, axis=(0, 2, 3), keepdims=True)
        var = jnp.var(y, axis=(0, 2, 3), keepdims=True)
        yn = (y - mean) / jnp.sqrt(var + EPS)
        return jnp.maximum(yn * g[None, :, None, None] + beta[None, :, None, None], 0.0)

    out = conv_bn_relu(out, params["c1_w"], params["c1_b"], params["bn1_g"], params["bn1_b"])
    out = conv_bn_relu(out, params["c2_w"], params["c2_b"], params["bn2_g"], params["bn2_b"])
    return out


# ---------------------------------- setup ------------------------------------

def init_params(key, in_channels, out_channels):
    k = jax.random.split(key, 6)
    f32 = jnp.float32
    return {
        # ConvTranspose2d weight layout: (Cin, Cout, kH, kW)
        "up_w": 0.1 * jax.random.normal(k[0], (in_channels, out_channels, 2, 2), f32),
        "up_b": 0.1 * jax.random.normal(k[1], (out_channels,), f32),
        # Conv2d weight layout: (Cout, Cin, kH, kW)
        "c1_w": 0.1 * jax.random.normal(k[2], (out_channels, in_channels, 3, 3), f32),
        "c1_b": 0.1 * jax.random.normal(k[3], (out_channels,), f32),
        "bn1_g": jnp.ones((out_channels,), f32),
        "bn1_b": jnp.zeros((out_channels,), f32),
        "c2_w": 0.1 * jax.random.normal(k[4], (out_channels, out_channels, 3, 3), f32),
        "c2_b": 0.1 * jax.random.normal(k[5], (out_channels,), f32),
        "bn2_g": jnp.ones((out_channels,), f32),
        "bn2_b": jnp.zeros((out_channels,), f32),
    }


if __name__ == "__main__":
    in_channels, out_channels = 8, 4
    key = jax.random.PRNGKey(0)
    kp, kc, kx = jax.random.split(key, 3)

    params = init_params(kp, in_channels, out_channels)
    # UNet-style shapes: skip connection supplies the remaining channels so the
    # concat has `in_channels` channels; bottleneck input is at half resolution.
    x_copy = jax.random.normal(kc, (2, in_channels - out_channels, 16, 16), jnp.float32)
    x = jax.random.normal(kx, (2, in_channels, 8, 8), jnp.float32)

    ref = jax.block_until_ready(_reference_forward(params, x_copy, x, interpolate=True))

    # f32 matmul operands: tight check against the f32 reference.
    fwd_f32 = build_decoder(params, x_copy.shape, x.shape, interpolate=True,
                            compute_dtype=jnp.float32)
    out = jax.block_until_ready(fwd_f32(x_copy, x))
    assert out.shape == (2, out_channels, 16, 16), out.shape
    assert bool(jnp.all(jnp.isfinite(out)))
    err = float(jnp.max(jnp.abs(out - ref)))
    assert err < 2e-3, f"f32 max abs error vs reference: {err}"

    # bf16 matmul operands (v6e/v7x MXU fast path); loose, deliberate tolerance.
    fwd_bf16 = build_decoder(params, x_copy.shape, x.shape, interpolate=True,
                             compute_dtype=jnp.bfloat16)
    out_bf = jax.block_until_ready(fwd_bf16(x_copy, x))
    assert bool(jnp.all(jnp.isfinite(out_bf)))
    err_bf = float(jnp.max(jnp.abs(out_bf - ref)))
    assert err_bf < 1e-1, f"bf16 max abs error vs reference: {err_bf}"

    print("KERNEL_OK")
</pallas_src>

<mosaic_0001>
module attributes {stable_mosaic.version = 11 : i64} {
  func.func @_decoder_kernel(%arg0: memref<4x512xf32, #tpu.memory_space<vmem>>, %arg1: memref<32x512xf32, #tpu.memory_space<vmem>>, %arg2: memref<8x32xf32, #tpu.memory_space<vmem>>, %arg3: memref<8x1xf32, #tpu.memory_space<vmem>>, %arg4: memref<1x512xf32, #tpu.memory_space<vmem>>, %arg5: memref<8x512xf32, #tpu.memory_space<vmem>>, %arg6: memref<8x72xf32, #tpu.memory_space<vmem>>, %arg7: memref<8x1xf32, #tpu.memory_space<vmem>>, %arg8: memref<8x1xf32, #tpu.memory_space<vmem>>, %arg9: memref<8x72xf32, #tpu.memory_space<vmem>>, %arg10: memref<8x1xf32, #tpu.memory_space<vmem>>, %arg11: memref<8x1xf32, #tpu.memory_space<vmem>>, %arg12: memref<8x512xf32, #tpu.memory_space<vmem>>, %arg13: memref<8x512xf32, #tpu.memory_space<vmem>>, %arg14: memref<72x512xf32, #tpu.memory_space<vmem>>) attributes {dimension_semantics = [], scalar_prefetch = 0 : i64, scratch_operands = 2 : i64, tpu.core_type = #tpu.core_type<tc>} {
    %c0 = arith.constant 0 : index
    %c0_0 = arith.constant 0 : index
    %0 = vector.load %arg2[%c0, %c0_0] : memref<8x32xf32, #tpu.memory_space<vmem>>, vector<8x32xf32>
    %c0_1 = arith.constant 0 : index
    %c0_2 = arith.constant 0 : index
    %1 = vector.load %arg1[%c0_1, %c0_2] : memref<32x512xf32, #tpu.memory_space<vmem>>, vector<32x512xf32>
    %cst = arith.constant dense<0.000000e+00> : vector<8x512xf32>
    %2 = tpu.matmul %0, %1, %cst {dimension_numbers = #tpu.dot_dimension_numbers<[1], [0], [0], [1], [0, 0, 1, 1], [], []>} : vector<8x32xf32>, vector<32x512xf32>, vector<8x512xf32> -> vector<8x512xf32>
    %c0_3 = arith.constant 0 : index
    %c0_4 = arith.constant 0 : index
    %3 = vector.load %arg3[%c0_3, %c0_4] : memref<8x1xf32, #tpu.memory_space<vmem>>, vector<8x1xf32>
    %c0_5 = arith.constant 0 : index
    %c0_6 = arith.constant 0 : index
    %4 = vector.load %arg4[%c0_5, %c0_6] : memref<1x512xf32, #tpu.memory_space<vmem>>, vector<1x512xf32>
    %5 = vector.broadcast %3 : vector<8x1xf32> to vector<8x512xf32>
    %6 = vector.broadcast %4 : vector<1x512xf32> to vector<8x512xf32>
    %7 = arith.mulf %5, %6 : vector<8x512xf32>
    %8 = arith.addf %2, %7 : vector<8x512xf32>
    %c0_7 = arith.constant 0 : index
    %c0_8 = arith.constant 0 : index
    %9 = vector.load %arg13[%c0_7, %c0_8] : memref<8x512xf32, #tpu.memory_space<vmem>>, vector<8x512xf32>
    tpu.vector_store %arg13[%c0_7, %c0_8], %8 {strides = array<i32>} : memref<8x512xf32, #tpu.memory_space<vmem>>, vector<8x512xf32>,
    %c0_9 = arith.constant 0 : index
    %c0_10 = arith.constant 0 : index
    %10 = vector.load %arg0[%c0_9, %c0_10] : memref<4x512xf32, #tpu.memory_space<vmem>>, vector<4x512xf32>
    %c0_11 = arith.constant 0 : index
    %c0_12 = arith.constant 0 : index
    %11 = vector.load %arg13[%c0_11, %c0_12] : memref<8x512xf32, #tpu.memory_space<vmem>>, vector<4x512xf32>
    tpu.vector_store %arg13[%c0_11, %c0_12], %10 {strides = array<i32>} : memref<8x512xf32, #tpu.memory_space<vmem>>, vector<4x512xf32>,
    %c0_13 = arith.constant 0 : index
    %c0_14 = arith.constant 0 : index
    %12 = vector.load %arg13[%c0_13, %c0_14] : memref<8x512xf32, #tpu.memory_space<vmem>>, vector<8x512xf32>
    %c0_15 = arith.constant 0 : index
    %c0_16 = arith.constant 0 : index
    %13 = vector.load %arg5[%c0_15, %c0_16] : memref<8x512xf32, #tpu.memory_space<vmem>>, vector<8x512xf32>
    %14 = vector.extract_strided_slice %13 {offsets = [0, 0], sizes = [1, 512], strides = [1, 1]} : vector<8x512xf32> to vector<1x512xf32>
    %15 = vector.extract_strided_slice %13 {offsets = [1, 0], sizes = [1, 512], strides = [1, 1]} : vector<8x512xf32> to vector<1x512xf32>
    %16 = vector.extract_strided_slice %13 {offsets = [2, 0], sizes = [1, 512], strides = [1, 1]} : vector<8x512xf32> to vector<1x512xf32>
    %17 = vector.extract_strided_slice %13 {offsets = [3, 0], sizes = [1, 512], strides = [1, 1]} : vector<8x512xf32> to vector<1x512xf32>
    %18 = vector.extract_strided_slice %13 {offsets = [4, 0], sizes = [1, 512], strides = [1, 1]} : vector<8x512xf32> to vector<1x512xf32>
    %19 = vector.extract_strided_slice %13 {offsets = [5, 0], sizes = [1, 512], strides = [1, 1]} : vector<8x512xf32> to vector<1x512xf32>
    %20 = vector.extract_strided_slice %13 {offsets = [6, 0], sizes = [1, 512], strides = [1, 1]} : vector<8x512xf32> to vector<1x512xf32>
    %21 = vector.extract_strided_slice %13 {offsets = [7, 0], sizes = [1, 512], strides = [1, 1]} : vector<8x512xf32> to vector<1x512xf32>
    %c17_i32 = arith.constant 17 : i32
    %22 = tpu.dynamic_rotate %12 by %c17_i32 dim 1 : vector<8x512xf32>, i32 -> vector<8x512xf32>
    %23 = vector.broadcast %14 : vector<1x512xf32> to vector<8x512xf32>
    %24 = arith.mulf %22, %23 : vector<8x512xf32>
    %c0_17 = arith.constant 0 : index
    %c0_18 = arith.constant 0 : index
    %25 = vector.load %arg14[%c0_17, %c0_18] : memref<72x512xf32, #tpu.memory_space<vmem>>, vector<8x512xf32>
    tpu.vector_store %arg14[%c0_17, %c0_18], %24 {strides = array<i32>} : memref<72x512xf32, #tpu.memory_space<vmem>>, vector<8x512xf32>,
    %c16_i32 = arith.constant 16 : i32
    %26 = tpu.dynamic_rotate %12 by %c16_i32 dim 1 : vector<8x512xf32>, i32 -> vector<8x512xf32>
    %27 = vector.broadcast %15 : vector<1x512xf32> to vector<8x512xf32>
    %28 = arith.mulf %26, %27 : vector<8x512xf32>
    %c8 = arith.constant 8 : index
    %c0_19 = arith.constant 0 : index
    %29 = vector.load %arg14[%c8, %c0_19] : memref<72x512xf32, #tpu.memory_space<vmem>>, vector<8x512xf32>
    tpu.vector_store %arg14[%c8, %c0_19], %28 {strides = array<i32>} : memref<72x512xf32, #tpu.memory_space<vmem>>, vector<8x512xf32>,
    %c15_i32 = arith.constant 15 : i32
    %30 = tpu.dynamic_rotate %12 by %c15_i32 dim 1 : vector<8x512xf32>, i32 -> vector<8x512xf32>
    %31 = vector.broadcast %16 : vector<1x512xf32> to vector<8x512xf32>
    %32 = arith.mulf %30, %31 : vector<8x512xf32>
    %c16 = arith.constant 16 : index
    %c0_20 = arith.constant 0 : index
    %33 = vector.load %arg14[%c16, %c0_20] : memref<72x512xf32, #tpu.memory_space<vmem>>, vector<8x512xf32>
    tpu.vector_store %arg14[%c16, %c0_20], %32 {strides = array<i32>} : memref<72x512xf32, #tpu.memory_space<vmem>>, vector<8x512xf32>,
    %c1_i32 = arith.constant 1 : i32
    %34 = tpu.dynamic_rotate %12 by %c1_i32 dim 1 : vector<8x512xf32>, i32 -> vector<8x512xf32>
    %35 = vector.broadcast %17 : vector<1x512xf32> to vector<8x512xf32>
    %36 = arith.mulf %34, %35 : vector<8x512xf32>
    %c24 = arith.constant 24 : index
    %c0_21 = arith.constant 0 : index
    %37 = vector.load %arg14[%c24, %c0_21] : memref<72x512xf32, #tpu.memory_space<vmem>>, vector<8x512xf32>
    tpu.vector_store %arg14[%c24, %c0_21], %36 {strides = array<i32>} : memref<72x512xf32, #tpu.memory_space<vmem>>, vector<8x512xf32>,
    %c32 = arith.constant 32 : index
    %c0_22 = arith.constant 0 : index
    %38 = vector.load %arg14[%c32, %c0_22] : memref<72x512xf32, #tpu.memory_space<vmem>>, vector<8x512xf32>
    tpu.vector_store %arg14[%c32, %c0_22], %12 {strides = array<i32>} : memref<72x512xf32, #tpu.memory_space<vmem>>, vector<8x512xf32>,
    %c511_i32 = arith.constant 511 : i32
    %39 = tpu.dynamic_rotate %12 by %c511_i32 dim 1 : vector<8x512xf32>, i32 -> vector<8x512xf32>
    %40 = vector.broadcast %18 : vector<1x512xf32> to vector<8x512xf32>
    %41 = arith.mulf %39, %40 : vector<8x512xf32>
    %c40 = arith.constant 40 : index
    %c0_23 = arith.constant 0 : index
    %42 = vector.load %arg14[%c40, %c0_23] : memref<72x512xf32, #tpu.memory_space<vmem>>, vector<8x512xf32>
    tpu.vector_store %arg14[%c40, %c0_23], %41 {strides = array<i32>} : memref<72x512xf32, #tpu.memory_space<vmem>>, vector<8x512xf32>,
    %c497_i32 = arith.constant 497 : i32
    %43 = tpu.dynamic_rotate %12 by %c497_i32 dim 1 : vector<8x512xf32>, i32 -> vector<8x512xf32>
    %44 = vector.broadcast %19 : vector<1x512xf32> to vector<8x512xf32>
    %45 = arith.mulf %43, %44 : vector<8x512xf32>
    %c48 = arith.constant 48 : index
    %c0_24 = arith.constant 0 : index
    %46 = vector.load %arg14[%c48, %c0_24] : memref<72x512xf32, #tpu.memory_space<vmem>>, vector<8x512xf32>
    tpu.vector_store %arg14[%c48, %c0_24], %45 {strides = array<i32>} : memref<72x512xf32, #tpu.memory_space<vmem>>, vector<8x512xf32>,
    %c496_i32 = arith.constant 496 : i32
    %47 = tpu.dynamic_rotate %12 by %c496_i32 dim 1 : vector<8x512xf32>, i32 -> vector<8x512xf32>
    %48 = vector.broadcast %20 : vector<1x512xf32> to vector<8x512xf32>
    %49 = arith.mulf %47, %48 : vector<8x512xf32>
    %c56 = arith.constant 56 : index
    %c0_25 = arith.constant 0 : index
    %50 = vector.load %arg14[%c56, %c0_25] : memref<72x512xf32, #tpu.memory_space<vmem>>, vector<8x512xf32>
    tpu.vector_store %arg14[%c56, %c0_25], %49 {strides = array<i32>} : memref<72x512xf32, #tpu.memory_space<vmem>>, vector<8x512xf32>,
    %c495_i32 = arith.constant 495 : i32
    %51 = tpu.dynamic_rotate %12 by %c495_i32 dim 1 : vector<8x512xf32>, i32 -> vector<8x512xf32>
    %52 = vector.broadcast %21 : vector<1x512xf32> to vector<8x512xf32>
    %53 = arith.mulf %51, %52 : vector<8x512xf32>
    %c64 = arith.constant 64 : index
    %c0_26 = arith.constant 0 : index
    %54 = vector.load %arg14[%c64, %c0_26] : memref<72x512xf32, #tpu.memory_space<vmem>>, vector<8x512xf32>
    tpu.vector_store %arg14[%c64, %c0_26], %53 {strides = array<i32>} : memref<72x512xf32, #tpu.memory_space<vmem>>, vector<8x512xf32>,
    %c0_27 = arith.constant 0 : index
    %c0_28 = arith.constant 0 : index
    %55 = vector.load %arg6[%c0_27, %c0_28] : memref<8x72xf32, #tpu.memory_space<vmem>>, vector<8x72xf32>
    %c0_29 = arith.constant 0 : index
    %c0_30 = arith.constant 0 : index
    %56 = vector.load %arg14[%c0_29, %c0_30] : memref<72x512xf32, #tpu.memory_space<vmem>>, vector<72x512xf32>
    %cst_31 = arith.constant dense<0.000000e+00> : vector<8x512xf32>
    %57 = tpu.matmul %55, %56, %cst_31 {dimension_numbers = #tpu.dot_dimension_numbers<[1], [0], [0], [1], [0, 0, 1, 1], [], []>} : vector<8x72xf32>, vector<72x512xf32>, vector<8x512xf32> -> vector<8x512xf32>
    %cst_32 = arith.constant dense<0.000000e+00> : vector<8xf32>
    %58 = vector.multi_reduction <add>, %57, %cst_32 [1] : vector<8x512xf32> to vector<8xf32>
    %59 = vector.shape_cast %58 : vector<8xf32> to vector<8x1xf32>
    %cst_33 = arith.constant 0.001953125 : f32
    %60 = vector.broadcast %cst_33 : f32 to vector<8x1xf32>
    %61 = arith.mulf %59, %60 : vector<8x1xf32>
    %62 = vector.broadcast %61 : vector<8x1xf32> to vector<8x512xf32>
    %63 = arith.subf %57, %62 : vector<8x512xf32>
    %64 = arith.mulf %63, %63 : vector<8x512xf32>
    %cst_34 = arith.constant dense<0.000000e+00> : vector<8xf32>
    %65 = vector.multi_reduction <add>, %64, %cst_34 [1] : vector<8x512xf32> to vector<8xf32>
    %66 = vector.shape_cast %65 : vector<8xf32> to vector<8x1xf32>
    %cst_35 = arith.constant 0.001953125 : f32
    %67 = vector.broadcast %cst_35 : f32 to vector<8x1xf32>
    %68 = arith.mulf %66, %67 : vector<8x1xf32>
    %c0_36 = arith.constant 0 : index
    %c0_37 = arith.constant 0 : index
    %69 = vector.load %arg7[%c0_36, %c0_37] : memref<8x1xf32, #tpu.memory_space<vmem>>, vector<8x1xf32>
    %cst_38 = arith.constant 9.99999974E-6 : f32
    %70 = vector.broadcast %cst_38 : f32 to vector<8x1xf32>
    %71 = arith.addf %68, %70 : vector<8x1xf32>
    %72 = math.rsqrt %71 : vector<8x1xf32>
    %73 = arith.mulf %69, %72 : vector<8x1xf32>
    %74 = vector.broadcast %73 : vector<8x1xf32> to vector<8x512xf32>
    %75 = arith.mulf %63, %74 : vector<8x512xf32>
    %c0_39 = arith.constant 0 : index
    %c0_40 = arith.constant 0 : index
    %76 = vector.load %arg8[%c0_39, %c0_40] : memref<8x1xf32, #tpu.memory_space<vmem>>, vector<8x1xf32>
    %77 = vector.broadcast %76 : vector<8x1xf32> to vector<8x512xf32>
    %78 = arith.addf %75, %77 : vector<8x512xf32>
    %cst_41 = arith.constant 0.000000e+00 : f32
    %79 = vector.broadcast %cst_41 : f32 to vector<8x512xf32>
    %80 = arith.maximumf %78, %79 : vector<8x512xf32>
    %c17_i32_42 = arith.constant 17 : i32
    %81 = tpu.dynamic_rotate %80 by %c17_i32_42 dim 1 : vector<8x512xf32>, i32 -> vector<8x512xf32>
    %82 = vector.broadcast %14 : vector<1x512xf32> to vector<8x512xf32>
    %83 = arith.mulf %81, %82 : vector<8x512xf32>
    %c0_43 = arith.constant 0 : index
    %c0_44 = arith.constant 0 : index
    %84 = vector.load %arg14[%c0_43, %c0_44] : memref<72x512xf32, #tpu.memory_space<vmem>>, vector<8x512xf32>
    tpu.vector_store %arg14[%c0_43, %c0_44], %83 {strides = array<i32>} : memref<72x512xf32, #tpu.memory_space<vmem>>, vector<8x512xf32>,
    %c16_i32_45 = arith.constant 16 : i32
    %85 = tpu.dynamic_rotate %80 by %c16_i32_45 dim 1 : vector<8x512xf32>, i32 -> vector<8x512xf32>
    %86 = vector.broadcast %15 : vector<1x512xf32> to vector<8x512xf32>
    %87 = arith.mulf %85, %86 : vector<8x512xf32>
    %c8_46 = arith.constant 8 : index
    %c0_47 = arith.constant 0 : index
    %88 = vector.load %arg14[%c8_46, %c0_47] : memref<72x512xf32, #tpu.memory_space<vmem>>, vector<8x512xf32>
    tpu.vector_store %arg14[%c8_46, %c0_47], %87 {strides = array<i32>} : memref<72x512xf32, #tpu.memory_space<vmem>>, vector<8x512xf32>,
    %c15_i32_48 = arith.constant 15 : i32
    %89 = tpu.dynamic_rotate %80 by %c15_i32_48 dim 1 : vector<8x512xf32>, i32 -> vector<8x512xf32>
    %90 = vector.broadcast %16 : vector<1x512xf32> to vector<8x512xf32>
    %91 = arith.mulf %89, %90 : vector<8x512xf32>
    %c16_49 = arith.constant 16 : index
    %c0_50 = arith.constant 0 : index
    %92 = vector.load %arg14[%c16_49, %c0_50] : memref<72x512xf32, #tpu.memory_space<vmem>>, vector<8x512xf32>
    tpu.vector_store %arg14[%c16_49, %c0_50], %91 {strides = array<i32>} : memref<72x512xf32, #tpu.memory_space<vmem>>, vector<8x512xf32>,
    %c1_i32_51 = arith.constant 1 : i32
    %93 = tpu.dynamic_rotate %80 by %c1_i32_51 dim 1 : vector<8x512xf32>, i32 -> vector<8x512xf32>
    %94 = vector.broadcast %17 : vector<1x512xf32> to vector<8x512xf32>
    %95 = arith.mulf %93, %94 : vector<8x512xf32>
    %c24_52 = arith.constant 24 : index
    %c0_53 = arith.constant 0 : index
    %96 = vector.load %arg14[%c24_52, %c0_53] : memref<72x512xf32, #tpu.memory_space<vmem>>, vector<8x512xf32>
    tpu.vector_store %arg14[%c24_52, %c0_53], %95 {strides = array<i32>} : memref<72x512xf32, #tpu.memory_space<vmem>>, vector<8x512xf32>,
    %c32_54 = arith.constant 32 : index
    %c0_55 = arith.constant 0 : index
    %97 = vector.load %arg14[%c32_54, %c0_55] : memref<72x512xf32, #tpu.memory_space<vmem>>, vector<8x512xf32>
    tpu.vector_store %arg14[%c32_54, %c0_55], %80 {strides = array<i32>} : memref<72x512xf32, #tpu.memory_space<vmem>>, vector<8x512xf32>,
    %c511_i32_56 = arith.constant 511 : i32
    %98 = tpu.dynamic_rotate %80 by %c511_i32_56 dim 1 : vector<8x512xf32>, i32 -> vector<8x512xf32>
    %99 = vector.broadcast %18 : vector<1x512xf32> to vector<8x512xf32>
    %100 = arith.mulf %98, %99 : vector<8x512xf32>
    %c40_57 = arith.constant 40 : index
    %c0_58 = arith.constant 0 : index
    %101 = vector.load %arg14[%c40_57, %c0_58] : memref<72x512xf32, #tpu.memory_space<vmem>>, vector<8x512xf32>
    tpu.vector_store %arg14[%c40_57, %c0_58], %100 {strides = array<i32>} : memref<72x512xf32, #tpu.memory_space<vmem>>, vector<8x512xf32>,
    %c497_i32_59 = arith.constant 497 : i32
    %102 = tpu.dynamic_rotate %80 by %c497_i32_59 dim 1 : vector<8x512xf32>, i32 -> vector<8x512xf32>
    %103 = vector.broadcast %19 : vector<1x512xf32> to vector<8x512xf32>
    %104 = arith.mulf %102, %103 : vector<8x512xf32>
    %c48_60 = arith.constant 48 : index
    %c0_61 = arith.constant 0 : index
    %105 = vector.load %arg14[%c48_60, %c0_61] : memref<72x512xf32, #tpu.memory_space<vmem>>, vector<8x512xf32>
    tpu.vector_store %arg14[%c48_60, %c0_61], %104 {strides = array<i32>} : memref<72x512xf32, #tpu.memory_space<vmem>>, vector<8x512xf32>,
    %c496_i32_62 = arith.constant 496 : i32
    %106 = tpu.dynamic_rotate %80 by %c496_i32_62 dim 1 : vector<8x512xf32>, i32 -> vector<8x512xf32>
    %107 = vector.broadcast %20 : vector<1x512xf32> to vector<8x512xf32>
    %108 = arith.mulf %106, %107 : vector<8x512xf32>
    %c56_63 = arith.constant 56 : index
    %c0_64 = arith.constant 0 : index
    %109 = vector.load %arg14[%c56_63, %c0_64] : memref<72x512xf32, #tpu.memory_space<vmem>>, vector<8x512xf32>
    tpu.vector_store %arg14[%c56_63, %c0_64], %108 {strides = array<i32>} : memref<72x512xf32, #tpu.memory_space<vmem>>, vector<8x512xf32>,
    %c495_i32_65 = arith.constant 495 : i32
    %110 = tpu.dynamic_rotate %80 by %c495_i32_65 dim 1 : vector<8x512xf32>, i32 -> vector<8x512xf32>
    %111 = vector.broadcast %21 : vector<1x512xf32> to vector<8x512xf32>
    %112 = arith.mulf %110, %111 : vector<8x512xf32>
    %c64_66 = arith.constant 64 : index
    %c0_67 = arith.constant 0 : index
    %113 = vector.load %arg14[%c64_66, %c0_67] : memref<72x512xf32, #tpu.memory_space<vmem>>, vector<8x512xf32>
    tpu.vector_store %arg14[%c64_66, %c0_67], %112 {strides = array<i32>} : memref<72x512xf32, #tpu.memory_space<vmem>>, vector<8x512xf32>,
    %c0_68 = arith.constant 0 : index
    %c0_69 = arith.constant 0 : index
    %114 = vector.load %arg9[%c0_68, %c0_69] : memref<8x72xf32, #tpu.memory_space<vmem>>, vector<8x72xf32>
    %c0_70 = arith.constant 0 : index
    %c0_71 = arith.constant 0 : index
    %115 = vector.load %arg14[%c0_70, %c0_71] : memref<72x512xf32, #tpu.memory_space<vmem>>, vector<72x512xf32>
    %cst_72 = arith.constant dense<0.000000e+00> : vector<8x512xf32>
    %116 = tpu.matmul %114, %115, %cst_72 {dimension_numbers = #tpu.dot_dimension_numbers<[1], [0], [0], [1], [0, 0, 1, 1], [], []>} : vector<8x72xf32>, vector<72x512xf32>, vector<8x512xf32> -> vector<8x512xf32>
    %cst_73 = arith.constant dense<0.000000e+00> : vector<8xf32>
    %117 = vector.multi_reduction <add>, %116, %cst_73 [1] : vector<8x512xf32> to vector<8xf32>
    %118 = vector.shape_cast %117 : vector<8xf32> to vector<8x1xf32>
    %cst_74 = arith.constant 0.001953125 : f32
    %119 = vector.broadcast %cst_74 : f32 to vector<8x1xf32>
    %120 = arith.mulf %118, %119 : vector<8x1xf32>
    %121 = vector.broadcast %120 : vector<8x1xf32> to vector<8x512xf32>
    %122 = arith.subf %116, %121 : vector<8x512xf32>
    %123 = arith.mulf %122, %122 : vector<8x512xf32>
    %cst_75 = arith.constant dense<0.000000e+00> : vector<8xf32>
    %124 = vector.multi_reduction <add>, %123, %cst_75 [1] : vector<8x512xf32> to vector<8xf32>
    %125 = vector.shape_cast %124 : vector<8xf32> to vector<8x1xf32>
    %cst_76 = arith.constant 0.001953125 : f32
    %126 = vector.broadcast %cst_76 : f32 to vector<8x1xf32>
    %127 = arith.mulf %125, %126 : vector<8x1xf32>
    %c0_77 = arith.constant 0 : index
    %c0_78 = arith.constant 0 : index
    %128 = vector.load %arg10[%c0_77, %c0_78] : memref<8x1xf32, #tpu.memory_space<vmem>>, vector<8x1xf32>
    %cst_79 = arith.constant 9.99999974E-6 : f32
    %129 = vector.broadcast %cst_79 : f32 to vector<8x1xf32>
    %130 = arith.addf %127, %129 : vector<8x1xf32>
    %131 = math.rsqrt %130 : vector<8x1xf32>
    %132 = arith.mulf %128, %131 : vector<8x1xf32>
    %133 = vector.broadcast %132 : vector<8x1xf32> to vector<8x512xf32>
    %134 = arith.mulf %122, %133 : vector<8x512xf32>
    %c0_80 = arith.constant 0 : index
    %c0_81 = arith.constant 0 : index
    %135 = vector.load %arg11[%c0_80, %c0_81] : memref<8x1xf32, #tpu.memory_space<vmem>>, vector<8x1xf32>
    %136 = vector.broadcast %135 : vector<8x1xf32> to vector<8x512xf32>
    %137 = arith.addf %134, %136 : vector<8x512xf32>
    %cst_82 = arith.constant 0.000000e+00 : f32
    %138 = vector.broadcast %cst_82 : f32 to vector<8x512xf32>
    %139 = arith.maximumf %137, %138 : vector<8x512xf32>
    %c0_83 = arith.constant 0 : index
    %c0_84 = arith.constant 0 : index
    %140 = vector.load %arg12[%c0_83, %c0_84] : memref<8x512xf32, #tpu.memory_space<vmem>>, vector<8x512xf32>
    tpu.vector_store %arg12[%c0_83, %c0_84], %139 {strides = array<i32>} : memref<8x512xf32, #tpu.memory_space<vmem>>, vector<8x512xf32>,
    return
  }
}

</mosaic_0001>

<llo_original>
// kernel: forward.1
$region0: #{forward.1}
  #allocation0 [shape = 'u32[]', space=smem, size = 0x4, offset = 0x4, fixed_abs, tag = 'smem constant byte address 0x4 - core index']
  #allocation1 [shape = 'u32[144,128]{1,0:T(1,128)}', space=vmem, size = 0x12000, scoped, tag = 'internal scratch']
  #allocation2 [shape = 'f32[8,512]{1,0:T(8,128)}', space=vmem, size = 0x4000, scoped, tag = 'scratch operand']
  #allocation3 [shape = 'f32[72,512]{1,0:T(8,128)}', space=vmem, size = 0x24000, scoped, tag = 'scratch operand']
  %s0 = inlined_call_operand.vmem [shape: f32[4,512], index: 0, kind: input, shape index: {}]
  %s1 = inlined_call_operand.vmem [shape: f32[32,512], index: 1, kind: input, shape index: {}]
  %s2 = inlined_call_operand.vmem [shape: f32[8,32], index: 2, kind: input, shape index: {}]
  %s3 = inlined_call_operand.vmem [shape: f32[8,1], index: 3, kind: input, shape index: {}]
  %s4 = inlined_call_operand.vmem [shape: f32[1,512], index: 4, kind: input, shape index: {}]
  %s5 = inlined_call_operand.vmem [shape: f32[8,512], index: 5, kind: input, shape index: {}]
  %s6 = inlined_call_operand.vmem [shape: f32[8,72], index: 6, kind: input, shape index: {}]
  %s7 = inlined_call_operand.vmem [shape: f32[8,1], index: 7, kind: input, shape index: {}, may-alias: {7,10}]
  %s8 = inlined_call_operand.vmem [shape: f32[8,1], index: 8, kind: input, shape index: {}, may-alias: {8,11}]
  %s9 = inlined_call_operand.vmem [shape: f32[8,72], index: 9, kind: input, shape index: {}]
  %s10 = inlined_call_operand.vmem [shape: f32[8,1], index: 10, kind: input, shape index: {}, may-alias: {7,10}]
  %s11 = inlined_call_operand.vmem [shape: f32[8,1], index: 11, kind: input, shape index: {}, may-alias: {8,11}]
  %s12 = inlined_call_operand.vmem [shape: f32[8,512], index: 12, kind: output, shape index: {}]
  %s13 = sld [smem:[#allocation0]]
  $region58: #{forward.1} parent=0
    _
  %s15 = ssub.s32 1, %s13
  %s16 = scalar_select 0, %s15, %s13
  // Predicated region
  $region2: #{forward.1} parent=0 // pred_check
    _
  $region3: #{forward.1} parent=0 // pred_check_branch
    %18 = sbr.rel (0) target = $region5
  $region4: #{forward.1} parent=0 // pred_region
    _
  $region5: #{forward.1} parent=0 // pred_fallthru
    _
  // Predicated region
  $region6: #{forward.1} parent=0 // pred_check
    _
  $region7: #{forward.1} parent=0 // pred_check_branch
    %20 = sbr.rel (0) target = $region9
  $region8: #{forward.1} parent=0 // pred_region
    _
  $region9: #{forward.1} parent=0 // pred_fallthru
    _
  // Predicated region
  $region10: #{forward.1} parent=0 // pred_check
    _
  $region11: #{forward.1} parent=0 // pred_check_branch
    %22 = sbr.rel (0) target = $region13
  $region12: #{forward.1} parent=0 // pred_region
    _
  $region13: #{forward.1} parent=0 // pred_fallthru
    _
  // Predicated region
  $region14: #{forward.1} parent=0 // pred_check
    _
  $region15: #{forward.1} parent=0 // pred_check_branch
    %24 = sbr.rel (0) target = $region17
  $region16: #{forward.1} parent=0 // pred_region
    _
  $region17: #{forward.1} parent=0 // pred_fallthru
    _
  // Predicated region
  $region18: #{forward.1} parent=0 // pred_check
    _
  $region19: #{forward.1} parent=0 // pred_check_branch
    %26 = sbr.rel (0) target = $region21
  $region20: #{forward.1} parent=0 // pred_region
    _
  $region21: #{forward.1} parent=0 // pred_fallthru
    _
  // Predicated region
  $region22: #{forward.1} parent=0 // pred_check
    _
  $region23: #{forward.1} parent=0 // pred_check_branch
    %28 = sbr.rel (0) target = $region25
  $region24: #{forward.1} parent=0 // pred_region
    _
  $region25: #{forward.1} parent=0 // pred_fallthru
    _
  // Predicated region
  $region26: #{forward.1} parent=0 // pred_check
    _
  $region27: #{forward.1} parent=0 // pred_check_branch
    %30 = sbr.rel (0) target = $region29
  $region28: #{forward.1} parent=0 // pred_region
    _
  $region29: #{forward.1} parent=0 // pred_fallthru
    _
  // Predicated region
  $region30: #{forward.1} parent=0 // pred_check
    _
  $region31: #{forward.1} parent=0 // pred_check_branch
    %32 = sbr.rel (0) target = $region33
  $region32: #{forward.1} parent=0 // pred_region
    _
  $region33: #{forward.1} parent=0 // pred_fallthru
    _
  // Predicated region
  $region34: #{forward.1} parent=0 // pred_check
    _
  $region35: #{forward.1} parent=0 // pred_check_branch
    %34 = sbr.rel (0) target = $region37
  $region36: #{forward.1} parent=0 // pred_region
    _
  $region37: #{forward.1} parent=0 // pred_fallthru
    _
  // Predicated region
  $region38: #{forward.1} parent=0 // pred_check
    _
  $region39: #{forward.1} parent=0 // pred_check_branch
    %36 = sbr.rel (0) target = $region41
  $region40: #{forward.1} parent=0 // pred_region
    _
  $region41: #{forward.1} parent=0 // pred_fallthru
    _
  // Predicated region
  $region42: #{forward.1} parent=0 // pred_check
    _
  $region43: #{forward.1} parent=0 // pred_check_branch
    %38 = sbr.rel (0) target = $region45
  $region44: #{forward.1} parent=0 // pred_region
    _
  $region45: #{forward.1} parent=0 // pred_fallthru
    _
  // Predicated region
  $region46: #{forward.1} parent=0 // pred_check
    _
  $region47: #{forward.1} parent=0 // pred_check_branch
    %40 = sbr.rel (0) target = $region49
  $region48: #{forward.1} parent=0 // pred_region
    _
  $region49: #{forward.1} parent=0 // pred_fallthru
    _
  %v41 = vld [vmem:[%s2] sm:$0xff]
  %v42 = vld [vmem:[%s1] sm:$0xff]
  %v43 = vld [vmem:[%s1 + $0x8] sm:$0xff]
  %v44 = vld [vmem:[%s1 + $0x10] sm:$0xff]
  %v45 = vld [vmem:[%s1 + $0x18] sm:$0xff]
  %v46 = vld [vmem:[%s1 + $0x20] sm:$0xff]
  %v47 = vld [vmem:[%s1 + $0x28] sm:$0xff]
  %v48 = vld [vmem:[%s1 + $0x30] sm:$0xff]
  %v49 = vld [vmem:[%s1 + $0x38] sm:$0xff]
  %v50 = vld [vmem:[%s1 + $0x40] sm:$0xff]
  %v51 = vld [vmem:[%s1 + $0x48] sm:$0xff]
  %v52 = vld [vmem:[%s1 + $0x50] sm:$0xff]
  %v53 = vld [vmem:[%s1 + $0x58] sm:$0xff]
  %v54 = vld [vmem:[%s1 + $0x60] sm:$0xff]
  %v55 = vld [vmem:[%s1 + $0x68] sm:$0xff]
  %v56 = vld [vmem:[%s1 + $0x70] sm:$0xff]
  %v57 = vld [vmem:[%s1 + $0x78] sm:$0xff]
  %v58 = vld [vmem:[%s3] sm:$0xff]
  %v59 = vld [vmem:[%s4] sm:$0xf]
  %61 = vset.pattern.permute.xlu0 0
  %62 = vperm.xlu0 %61, %v58
  %v63 = vpop.permute.xlu0 %62
  %v66 = vlaneseq
  %v67 = vshrl.u32 %v66, 7
  %v68 = vsub.s32 0, %v67
  %v69 = vrot.slane %v59, %v68
  %v70 = vlaneseq
  %v71 = vshrl.u32 %v70, 7
  %v72 = vsub.s32 1, %v71
  %v73 = vrot.slane %v59, %v72
  %v74 = vlaneseq
  %v75 = vshrl.u32 %v74, 7
  %v76 = vsub.s32 2, %v75
  %v77 = vrot.slane %v59, %v76
  %v78 = vlaneseq
  %v79 = vshrl.u32 %v78, 7
  %v80 = vsub.s32 3, %v79
  %v81 = vrot.slane %v59, %v80
  %v86 = vmul.f32 %v63, %v69
  %v87 = vmul.f32 %v63, %v73
  %v88 = vmul.f32 %v63, %v77
  %v89 = vmul.f32 %v63, %v81
  %vm90 = vcmask 261120
  %v92 = vsel %vm90, %v41, 0
  %94 = vmatprep.subr.mxu0 0.0
  %95 = vmatpush1.msra.mxu0 0.0
  %96 = vmatprep.subr.mxu0 0.0
  %97 = vmatpush1.msra.mxu0 0.0
  %98 = vmatprep.subr.mxu0 0.0
  %99 = vmatpush1.msra.mxu0 0.0
  %100 = vmatprep.subr.mxu0 0.0
  %101 = vmatpush1.msra.mxu0 0.0
  %102 = vmatprep.subr.mxu0 0.0
  %103 = vmatpush1.msra.mxu0 0.0
  %104 = vmatprep.subr.mxu0 0.0
  %105 = vmatpush1.msra.mxu0 0.0
  %106 = vmatprep.subr.mxu0 0.0
  %107 = vmatpush1.msra.mxu0 0.0
  %108 = vmatprep.subr.mxu0 0.0
  %109 = vmatpush1.msra.mxu0 0.0
  %110 = vmatprep.subr.mxu0 0.0
  %111 = vmatpush1.msra.mxu0 0.0
  %112 = vmatprep.subr.mxu0 0.0
  %113 = vmatpush1.msra.mxu0 0.0
  %114 = vmatprep.subr.mxu0 0.0
  %115 = vmatpush1.msra.mxu0 0.0
  %116 = vmatprep.subr.mxu0 0.0
  %117 = vmatpush1.msra.mxu0 0.0
  %118 = vmatprep.subr.mxu0 %v55
  %119 = vmatpush1.msra.mxu0 %v54
  %120 = vmatprep.subr.mxu0 %v51
  %121 = vmatpush1.msra.mxu0 %v50
  %122 = vmatprep.subr.mxu0 %v47
  %123 = vmatpush1.msra.mxu0 %v46
  %124 = vmatprep.subr.mxu0 %v43
  %125 = vmatpush1.msra.mxu0 %v42
  %126 = vmatprep.subr.mxu0 0.0
  %127 = vmatpush2.msra.mxu0 0.0
  %128 = vmatprep.subr.mxu0 0.0
  %129 = vmatpush2.msra.mxu0 0.0
  %130 = vmatprep.subr.mxu0 0.0
  %131 = vmatpush2.msra.mxu0 0.0
  %132 = vmatprep.subr.mxu0 0.0
  %133 = vmatpush2.msra.mxu0 0.0
  %134 = vmatprep.subr.mxu0 0.0
  %135 = vmatpush2.msra.mxu0 0.0
  %136 = vmatprep.subr.mxu0 0.0
  %137 = vmatpush2.msra.mxu0 0.0
  %138 = vmatprep.subr.mxu0 0.0
  %139 = vmatpush2.msra.mxu0 0.0
  %140 = vmatprep.subr.mxu0 0.0
  %141 = vmatpush2.msra.mxu0 0.0
  %142 = vmatprep.subr.mxu0 0.0
  %143 = vmatpush2.msra.mxu0 0.0
  %144 = vmatprep.subr.mxu0 0.0
  %145 = vmatpush2.msra.mxu0 0.0
  %146 = vmatprep.subr.mxu0 0.0
  %147 = vmatpush2.msra.mxu0 0.0
  %148 = vmatprep.subr.mxu0 0.0
  %149 = vmatpush2.msra.mxu0 0.0
  %150 = vmatprep.subr.mxu0 0.0
  %151 = vmatpush2.msra.mxu0 0.0
  %152 = vmatprep.subr.mxu0 0.0
  %153 = vmatpush2.msra.mxu0 0.0
  %154 = vmatprep.subr.mxu0 0.0
  %155 = vmatpush2.msra.mxu0 0.0
  %156 = vmatprep.subr.mxu0 0.0
  %157 = vmatpush2.msra.mxu0 0.0
  %158 = vmatprep.mubr.f32.mxu0 0.0
  %159 = vmatmul.mubr.f32.gmra.mxu0 %v92
  %v160 = vpop.f32.mrf.mxu0
  %v161 = vadd.f32 %v86, %v160
  %v162 = vpop.f32.mrf.mxu0
  %v163 = vadd.f32 %v87, %v162
  %164 = vdwg.mxu0
  %165 = vmatprep.subr.mxu0 0.0
  %166 = vmatpush1.msra.mxu0 0.0
  %167 = vmatprep.subr.mxu0 0.0
  %168 = vmatpush1.msra.mxu0 0.0
  %169 = vmatprep.subr.mxu0 0.0
  %170 = vmatpush1.msra.mxu0 0.0
  %171 = vmatprep.subr.mxu0 0.0
  %172 = vmatpush1.msra.mxu0 0.0
  %173 = vmatprep.subr.mxu0 0.0
  %174 = vmatpush1.msra.mxu0 0.0
  %175 = vmatprep.subr.mxu0 0.0
  %176 = vmatpush1.msra.mxu0 0.0
  %177 = vmatprep.subr.mxu0 0.0
  %178 = vmatpush1.msra.mxu0 0.0
  %179 = vmatprep.subr.mxu0 0.0
  %180 = vmatpush1.msra.mxu0 0.0
  %181 = vmatprep.subr.mxu0 0.0
  %182 = vmatpush1.msra.mxu0 0.0
  %183 = vmatprep.subr.mxu0 0.0
  %184 = vmatpush1.msra.mxu0 0.0
  %185 = vmatprep.subr.mxu0 0.0
  %186 = vmatpush1.msra.mxu0 0.0
  %187 = vmatprep.subr.mxu0 0.0
  %188 = vmatpush1.msra.mxu0 0.0
  %189 = vmatprep.subr.mxu0 %v57
  %190 = vmatpush1.msra.mxu0 %v56
  %191 = vmatprep.subr.mxu0 %v53
  %192 = vmatpush1.msra.mxu0 %v52
  %193 = vmatprep.subr.mxu0 %v49
  %194 = vmatpush1.msra.mxu0 %v48
  %195 = vmatprep.subr.mxu0 %v45
  %196 = vmatpush1.msra.mxu0 %v44
  %197 = vmatprep.subr.mxu0 0.0
  %198 = vmatpush2.msra.mxu0 0.0
  %199 = vmatprep.subr.mxu0 0.0
  %200 = vmatpush2.msra.mxu0 0.0
  %201 = vmatprep.subr.mxu0 0.0
  %202 = vmatpush2.msra.mxu0 0.0
  %203 = vmatprep.subr.mxu0 0.0
  %204 = vmatpush2.msra.mxu0 0.0
  %205 = vmatprep.subr.mxu0 0.0
  %206 = vmatpush2.msra.mxu0 0.0
  %207 = vmatprep.subr.mxu0 0.0
  %208 = vmatpush2.msra.mxu0 0.0
  %209 = vmatprep.subr.mxu0 0.0
  %210 = vmatpush2.msra.mxu0 0.0
  %211 = vmatprep.subr.mxu0 0.0
  %212 = vmatpush2.msra.mxu0 0.0
  %213 = vmatprep.subr.mxu0 0.0
  %214 = vmatpush2.msra.mxu0 0.0
  %215 = vmatprep.subr.mxu0 0.0
  %216 = vmatpush2.msra.mxu0 0.0
  %217 = vmatprep.subr.mxu0 0.0
  %218 = vmatpush2.msra.mxu0 0.0
  %219 = vmatprep.subr.mxu0 0.0
  %220 = vmatpush2.msra.mxu0 0.0
  %221 = vmatprep.subr.mxu0 0.0
  %222 = vmatpush2.msra.mxu0 0.0
  %223 = vmatprep.subr.mxu0 0.0
  %224 = vmatpush2.msra.mxu0 0.0
  %225 = vmatprep.subr.mxu0 0.0
  %226 = vmatpush2.msra.mxu0 0.0
  %227 = vmatprep.subr.mxu0 0.0
  %228 = vmatpush2.msra.mxu0 0.0
  %229 = vmatprep.mubr.f32.mxu0 0.0
  %230 = vmatmul.mubr.f32.gmra.mxu0 %v92
  %v231 = vpop.f32.mrf.mxu0
  %v232 = vadd.f32 %v88, %v231
  %v233 = vpop.f32.mrf.mxu0
  %v234 = vadd.f32 %v89, %v233
  %235 = vdwg.mxu0
  %236 = vst [vmem:[#allocation2] sm:$0xff] %v161
  %237 = vst [vmem:[#allocation2 + $0x8] sm:$0xff] %v163
  %238 = vst [vmem:[#allocation2 + $0x10] sm:$0xff] %v232
  %239 = vst [vmem:[#allocation2 + $0x18] sm:$0xff] %v234
  %v240 = vld [vmem:[%s0] sm:$0xff]
  %v241 = vld [vmem:[%s0 + $0x8] sm:$0xff]
  %v244 = vcombine.high %v240, %v240
  %v245 = vcombine.high %v241, %v241
  %248 = vst [vmem:[#allocation2] sm:$0xf] %v240
  %249 = vst [vmem:[#allocation2 + $0x8] sm:$0xf] %v244
  %250 = vst [vmem:[#allocation2 + $0x10] sm:$0xf] %v241
  %251 = vst [vmem:[#allocation2 + $0x18] sm:$0xf] %v245
  %v252 = vld [vmem:[#allocation2] sm:$0xff]
  %v253 = vld [vmem:[#allocation2 + $0x8] sm:$0xff]
  %v254 = vld [vmem:[#allocation2 + $0x10] sm:$0xff]
  %v255 = vld [vmem:[#allocation2 + $0x18] sm:$0xff]
  %v256 = vld [vmem:[%s5] sm:$0xff]
  %v257 = vld [vmem:[%s5 + $0x8] sm:$0xff]
  %v258 = vld [vmem:[%s5 + $0x10] sm:$0xff]
  %v259 = vld [vmem:[%s5 + $0x18] sm:$0xff]
  %260 = vrot.lane.b32.xlu0 %v252, 17
  %v261 = vpop.permute.xlu0 %260
  %262 = vrot.lane.b32.xlu0 %v253, 17
  %v263 = vpop.permute.xlu0 %262
  %264 = vrot.lane.b32.xlu0 %v254, 17
  %v265 = vpop.permute.xlu0 %264
  %266 = vrot.lane.b32.xlu0 %v255, 17
  %v267 = vpop.permute.xlu0 %266
  %v268 = vlaneseq
  %v269 = vand.u32 %v268, 127
  %vm270 = vcmp.lt.s32.totalorder %v269, 17
  %v271 = vsel %vm270, %v265, %v267
  %v272 = vsel %vm270, %v263, %v265
  %v273 = vsel %vm270, %v261, %v263
  %v274 = vsel %vm270, %v267, %v261
  %v275 = vlaneseq
  %v276 = vshrl.u32 %v275, 7
  %v277 = vsub.s32 0, %v276
  %v278 = vrot.slane %v256, %v277
  %v279 = vlaneseq
  %v280 = vshrl.u32 %v279, 7
  %v281 = vsub.s32 0, %v280
  %v282 = vrot.slane %v257, %v281
  %v283 = vlaneseq
  %v284 = vshrl.u32 %v283, 7
  %v285 = vsub.s32 0, %v284
  %v286 = vrot.slane %v258, %v285
  %v287 = vlaneseq
  %v288 = vshrl.u32 %v287, 7
  %v289 = vsub.s32 0, %v288
  %v290 = vrot.slane %v259, %v289
  %v291 = vmul.f32 %v274, %v278
  %v292 = vmul.f32 %v273, %v282
  %v293 = vmul.f32 %v272, %v286
  %v294 = vmul.f32 %v271, %v290
  %295 = vst [vmem:[#allocation3] sm:$0xff] %v291
  %296 = vst [vmem:[#allocation3 + $0x8] sm:$0xff] %v292
  %297 = vst [vmem:[#allocation3 + $0x10] sm:$0xff] %v293
  %298 = vst [vmem:[#allocation3 + $0x18] sm:$0xff] %v294
  %299 = vrot.lane.b32.xlu0 %v252, 16
  %v300 = vpop.permute.xlu0 %299
  %301 = vrot.lane.b32.xlu0 %v253, 16
  %v302 = vpop.permute.xlu0 %301
  %303 = vrot.lane.b32.xlu0 %v254, 16
  %v304 = vpop.permute.xlu0 %303
  %305 = vrot.lane.b32.xlu0 %v255, 16
  %v306 = vpop.permute.xlu0 %305
  %vm307 = vcmp.lt.s32.totalorder %v269, 16
  %v308 = vsel %vm307, %v304, %v306
  %v309 = vsel %vm307, %v302, %v304
  %v310 = vsel %vm307, %v300, %v302
  %v311 = vsel %vm307, %v306, %v300
  %v312 = vlaneseq
  %v313 = vshrl.u32 %v312, 7
  %v314 = vsub.s32 1, %v313
  %v315 = vrot.slane %v256, %v314
  %v316 = vlaneseq
  %v317 = vshrl.u32 %v316, 7
  %v318 = vsub.s32 1, %v317
  %v319 = vrot.slane %v257, %v318
  %v320 = vlaneseq
  %v321 = vshrl.u32 %v320, 7
  %v322 = vsub.s32 1, %v321
  %v323 = vrot.slane %v258, %v322
  %v324 = vlaneseq
  %v325 = vshrl.u32 %v324, 7
  %v326 = vsub.s32 1, %v325
  %v327 = vrot.slane %v259, %v326
  %v328 = vmul.f32 %v311, %v315
  %v329 = vmul.f32 %v310, %v319
  %v330 = vmul.f32 %v309, %v323
  %v331 = vmul.f32 %v308, %v327
  %332 = vst [vmem:[#allocation3 + $0x20] sm:$0xff] %v328
  %333 = vst [vmem:[#allocation3 + $0x28] sm:$0xff] %v329
  %334 = vst [vmem:[#allocation3 + $0x30] sm:$0xff] %v330
  %335 = vst [vmem:[#allocation3 + $0x38] sm:$0xff] %v331
  %336 = vrot.lane.b32.xlu0 %v252, 15
  %v337 = vpop.permute.xlu0 %336
  %338 = vrot.lane.b32.xlu0 %v253, 15
  %v339 = vpop.permute.xlu0 %338
  %340 = vrot.lane.b32.xlu0 %v254, 15
  %v341 = vpop.permute.xlu0 %340
  %342 = vrot.lane.b32.xlu0 %v255, 15
  %v343 = vpop.permute.xlu0 %342
  %vm344 = vcmp.lt.s32.totalorder %v269, 15
  %v345 = vsel %vm344, %v341, %v343
  %v346 = vsel %vm344, %v339, %v341
  %v347 = vsel %vm344, %v337, %v339
  %v348 = vsel %vm344, %v343, %v337
  %v349 = vlaneseq
  %v350 = vshrl.u32 %v349, 7
  %v351 = vsub.s32 2, %v350
  %v352 = vrot.slane %v256, %v351
  %v353 = vlaneseq
  %v354 = vshrl.u32 %v353, 7
  %v355 = vsub.s32 2, %v354
  %v356 = vrot.slane %v257, %v355
  %v357 = vlaneseq
  %v358 = vshrl.u32 %v357, 7
  %v359 = vsub.s32 2, %v358
  %v360 = vrot.slane %v258, %v359
  %v361 = vlaneseq
  %v362 = vshrl.u32 %v361, 7
  %v363 = vsub.s32 2, %v362
  %v364 = vrot.slane %v259, %v363
  %v365 = vmul.f32 %v348, %v352
  %v366 = vmul.f32 %v347, %v356
  %v367 = vmul.f32 %v346, %v360
  %v368 = vmul.f32 %v345, %v364
  %369 = vst [vmem:[#allocation3 + $0x40] sm:$0xff] %v365
  %370 = vst [vmem:[#allocation3 + $0x48] sm:$0xff] %v366
  %371 = vst [vmem:[#allocation3 + $0x50] sm:$0xff] %v367
  %372 = vst [vmem:[#allocation3 + $0x58] sm:$0xff] %v368
  %373 = vrot.lane.b32.xlu0 %v252, 1
  %v374 = vpop.permute.xlu0 %373
  %375 = vrot.lane.b32.xlu0 %v253, 1
  %v376 = vpop.permute.xlu0 %375
  %377 = vrot.lane.b32.xlu0 %v254, 1
  %v378 = vpop.permute.xlu0 %377
  %379 = vrot.lane.b32.xlu0 %v255, 1
  %v380 = vpop.permute.xlu0 %379
  %vm381 = vcmp.lt.s32.totalorder %v269, 1
  %v382 = vsel %vm381, %v378, %v380
  %v383 = vsel %vm381, %v376, %v378
  %v384 = vsel %vm381, %v374, %v376
  %v385 = vsel %vm381, %v380, %v374
  %v386 = vlaneseq
  %v387 = vshrl.u32 %v386, 7
  %v388 = vsub.s32 3, %v387
  %v389 = vrot.slane %v256, %v388
  %v390 = vlaneseq
  %v391 = vshrl.u32 %v390, 7
  %v392 = vsub.s32 3, %v391
  %v393 = vrot.slane %v257, %v392
  %v394 = vlaneseq
  %v395 = vshrl.u32 %v394, 7
  %v396 = vsub.s32 3, %v395
  %v397 = vrot.slane %v258, %v396
  %v398 = vlaneseq
  %v399 = vshrl.u32 %v398, 7
  %v400 = vsub.s32 3, %v399
  %v401 = vrot.slane %v259, %v400
  %v402 = vmul.f32 %v385, %v389
  %v403 = vmul.f32 %v384, %v393
  %v404 = vmul.f32 %v383, %v397
  %v405 = vmul.f32 %v382, %v401
  %406 = vst [vmem:[#allocation3 + $0x60] sm:$0xff] %v402
  %407 = vst [vmem:[#allocation3 + $0x68] sm:$0xff] %v403
  %408 = vst [vmem:[#allocation3 + $0x70] sm:$0xff] %v404
  %409 = vst [vmem:[#allocation3 + $0x78] sm:$0xff] %v405
  %410 = vst [vmem:[#allocation3 + $0x80] sm:$0xff] %v252
  %411 = vst [vmem:[#allocation3 + $0x88] sm:$0xff] %v253
  %412 = vst [vmem:[#allocation3 + $0x90] sm:$0xff] %v254
  %413 = vst [vmem:[#allocation3 + $0x98] sm:$0xff] %v255
  %414 = vrot.lane.b32.xlu0 %v252, 127
  %v415 = vpop.permute.xlu0 %414
  %416 = vrot.lane.b32.xlu0 %v253, 127
  %v417 = vpop.permute.xlu0 %416
  %418 = vrot.lane.b32.xlu0 %v254, 127
  %v419 = vpop.permute.xlu0 %418
  %420 = vrot.lane.b32.xlu0 %v255, 127
  %v421 = vpop.permute.xlu0 %420
  %vm422 = vcmp.lt.s32.totalorder %v269, 127
  %v423 = vsel %vm422, %v419, %v421
  %v424 = vsel %vm422, %v417, %v419
  %v425 = vsel %vm422, %v415, %v417
  %v426 = vsel %vm422, %v421, %v415
  %v427 = vlaneseq
  %v428 = vshrl.u32 %v427, 7
  %v429 = vsub.s32 4, %v428
  %v430 = vrot.slane %v256, %v429
  %v431 = vlaneseq
  %v432 = vshrl.u32 %v431, 7
  %v433 = vsub.s32 4, %v432
  %v434 = vrot.slane %v257, %v433
  %v435 = vlaneseq
  %v436 = vshrl.u32 %v435, 7
  %v437 = vsub.s32 4, %v436
  %v438 = vrot.slane %v258, %v437
  %v439 = vlaneseq
  %v440 = vshrl.u32 %v439, 7
  %v441 = vsub.s32 4, %v440
  %v442 = vrot.slane %v259, %v441
  %v443 = vmul.f32 %v425, %v430
  %v444 = vmul.f32 %v424, %v434
  %v445 = vmul.f32 %v423, %v438
  %v446 = vmul.f32 %v426, %v442
  %447 = vst [vmem:[#allocation3 + $0xa0] sm:$0xff] %v443
  %448 = vst [vmem:[#allocation3 + $0xa8] sm:$0xff] %v444
  %449 = vst [vmem:[#allocation3 + $0xb0] sm:$0xff] %v445
  %450 = vst [vmem:[#allocation3 + $0xb8] sm:$0xff] %v446
  %451 = vrot.lane.b32.xlu0 %v252, 113
  %v452 = vpop.permute.xlu0 %451
  %453 = vrot.lane.b32.xlu0 %v253, 113
  %v454 = vpop.permute.xlu0 %453
  %455 = vrot.lane.b32.xlu0 %v254, 113
  %v456 = vpop.permute.xlu0 %455
  %457 = vrot.lane.b32.xlu0 %v255, 113
  %v458 = vpop.permute.xlu0 %457
  %vm459 = vcmp.lt.s32.totalorder %v269, 113
  %v460 = vsel %vm459, %v456, %v458
  %v461 = vsel %vm459, %v454, %v456
  %v462 = vsel %vm459, %v452, %v454
  %v463 = vsel %vm459, %v458, %v452
  %v464 = vlaneseq
  %v465 = vshrl.u32 %v464, 7
  %v466 = vsub.s32 5, %v465
  %v467 = vrot.slane %v256, %v466
  %v468 = vlaneseq
  %v469 = vshrl.u32 %v468, 7
  %v470 = vsub.s32 5, %v469
  %v471 = vrot.slane %v257, %v470
  %v472 = vlaneseq
  %v473 = vshrl.u32 %v472, 7
  %v474 = vsub.s32 5, %v473
  %v475 = vrot.slane %v258, %v474
  %v476 = vlaneseq
  %v477 = vshrl.u32 %v476, 7
  %v478 = vsub.s32 5, %v477
  %v479 = vrot.slane %v259, %v478
  %v480 = vmul.f32 %v462, %v467
  %v481 = vmul.f32 %v461, %v471
  %v482 = vmul.f32 %v460, %v475
  %v483 = vmul.f32 %v463, %v479
  %484 = vst [vmem:[#allocation3 + $0xc0] sm:$0xff] %v480
  %485 = vst [vmem:[#allocation3 + $0xc8] sm:$0xff] %v481
  %486 = vst [vmem:[#allocation3 + $0xd0] sm:$0xff] %v482
  %487 = vst [vmem:[#allocation3 + $0xd8] sm:$0xff] %v483
  %488 = vrot.lane.b32.xlu0 %v252, 112
  %v489 = vpop.permute.xlu0 %488
  %490 = vrot.lane.b32.xlu0 %v253, 112
  %v491 = vpop.permute.xlu0 %490
  %492 = vrot.lane.b32.xlu0 %v254, 112
  %v493 = vpop.permute.xlu0 %492
  %494 = vrot.lane.b32.xlu0 %v255, 112
  %v495 = vpop.permute.xlu0 %494
  %vm496 = vcmp.lt.s32.totalorder %v269, 112
  %v497 = vsel %vm496, %v493, %v495
  %v498 = vsel %vm496, %v491, %v493
  %v499 = vsel %vm496, %v489, %v491
  %v500 = vsel %vm496, %v495, %v489
  %v501 = vlaneseq
  %v502 = vshrl.u32 %v501, 7
  %v503 = vsub.s32 6, %v502
  %v504 = vrot.slane %v256, %v503
  %v505 = vlaneseq
  %v506 = vshrl.u32 %v505, 7
  %v507 = vsub.s32 6, %v506
  %v508 = vrot.slane %v257, %v507
  %v509 = vlaneseq
  %v510 = vshrl.u32 %v509, 7
  %v511 = vsub.s32 6, %v510
  %v512 = vrot.slane %v258, %v511
  %v513 = vlaneseq
  %v514 = vshrl.u32 %v513, 7
  %v515 = vsub.s32 6, %v514
  %v516 = vrot.slane %v259, %v515
  %v517 = vmul.f32 %v499, %v504
  %v518 = vmul.f32 %v498, %v508
  %v519 = vmul.f32 %v497, %v512
  %v520 = vmul.f32 %v500, %v516
  %521 = vst [vmem:[#allocation3 + $0xe0] sm:$0xff] %v517
  %522 = vst [vmem:[#allocation3 + $0xe8] sm:$0xff] %v518
  %523 = vst [vmem:[#allocation3 + $0xf0] sm:$0xff] %v519
  %524 = vst [vmem:[#allocation3 + $0xf8] sm:$0xff] %v520
  %525 = vrot.lane.b32.xlu0 %v252, 111
  %v526 = vpop.permute.xlu0 %525
  %527 = vrot.lane.b32.xlu0 %v253, 111
  %v528 = vpop.permute.xlu0 %527
  %529 = vrot.lane.b32.xlu0 %v254, 111
  %v530 = vpop.permute.xlu0 %529
  %531 = vrot.lane.b32.xlu0 %v255, 111
  %v532 = vpop.permute.xlu0 %531
  %vm533 = vcmp.lt.s32.totalorder %v269, 111
  %v534 = vsel %vm533, %v530, %v532
  %v535 = vsel %vm533, %v528, %v530
  %v536 = vsel %vm533, %v526, %v528
  %v537 = vsel %vm533, %v532, %v526
  %v538 = vlaneseq
  %v539 = vshrl.u32 %v538, 7
  %v540 = vsub.s32 7, %v539
  %v541 = vrot.slane %v256, %v540
  %v542 = vlaneseq
  %v543 = vshrl.u32 %v542, 7
  %v544 = vsub.s32 7, %v543
  %v545 = vrot.slane %v257, %v544
  %v546 = vlaneseq
  %v547 = vshrl.u32 %v546, 7
  %v548 = vsub.s32 7, %v547
  %v549 = vrot.slane %v258, %v548
  %v550 = vlaneseq
  %v551 = vshrl.u32 %v550, 7
  %v552 = vsub.s32 7, %v551
  %v553 = vrot.slane %v259, %v552
  %v554 = vmul.f32 %v536, %v541
  %v555 = vmul.f32 %v535, %v545
  %v556 = vmul.f32 %v534, %v549
  %v557 = vmul.f32 %v537, %v553
  %558 = vst [vmem:[#allocation3 + $0x100] sm:$0xff] %v554
  %559 = vst [vmem:[#allocation3 + $0x108] sm:$0xff] %v555
  %560 = vst [vmem:[#allocation3 + $0x110] sm:$0xff] %v556
  %561 = vst [vmem:[#allocation3 + $0x118] sm:$0xff] %v557
  %v562 = vld [vmem:[%s6] sm:$0xff]
  %v563 = vld [vmem:[#allocation3] sm:$0xff]
  %v564 = vld [vmem:[#allocation3 + $0x8] sm:$0xff]
  %v565 = vld [vmem:[#allocation3 + $0x10] sm:$0xff]
  %v566 = vld [vmem:[#allocation3 + $0x18] sm:$0xff]
  %v567 = vld [vmem:[#allocation3 + $0x20] sm:$0xff]
  %v568 = vld [vmem:[#allocation3 + $0x28] sm:$0xff]
  %v569 = vld [vmem:[#allocation3 + $0x30] sm:$0xff]
  %v570 = vld [vmem:[#allocation3 + $0x38] sm:$0xff]
  %v571 = vld [vmem:[#allocation3 + $0x40] sm:$0xff]
  %v572 = vld [vmem:[#allocation3 + $0x48] sm:$0xff]
  %v573 = vld [vmem:[#allocation3 + $0x50] sm:$0xff]
  %v574 = vld [vmem:[#allocation3 + $0x58] sm:$0xff]
  %v575 = vld [vmem:[#allocation3 + $0x60] sm:$0xff]
  %v576 = vld [vmem:[#allocation3 + $0x68] sm:$0xff]
  %v577 = vld [vmem:[#allocation3 + $0x70] sm:$0xff]
  %v578 = vld [vmem:[#allocation3 + $0x78] sm:$0xff]
  %v579 = vld [vmem:[#allocation3 + $0x80] sm:$0xff]
  %v580 = vld [vmem:[#allocation3 + $0x88] sm:$0xff]
  %v581 = vld [vmem:[#allocation3 + $0x90] sm:$0xff]
  %v582 = vld [vmem:[#allocation3 + $0x98] sm:$0xff]
  %v583 = vld [vmem:[#allocation3 + $0xa0] sm:$0xff]
  %v584 = vld [vmem:[#allocation3 + $0xa8] sm:$0xff]
  %v585 = vld [vmem:[#allocation3 + $0xb0] sm:$0xff]
  %v586 = vld [vmem:[#allocation3 + $0xb8] sm:$0xff]
  %v587 = vld [vmem:[#allocation3 + $0xc0] sm:$0xff]
  %v588 = vld [vmem:[#allocation3 + $0xc8] sm:$0xff]
  %v589 = vld [vmem:[#allocation3 + $0xd0] sm:$0xff]
  %v590 = vld [vmem:[#allocation3 + $0xd8] sm:$0xff]
  %v591 = vld [vmem:[#allocation3 + $0xe0] sm:$0xff]
  %v592 = vld [vmem:[#allocation3 + $0xe8] sm:$0xff]
  %v593 = vld [vmem:[#allocation3 + $0xf0] sm:$0xff]
  %v594 = vld [vmem:[#allocation3 + $0xf8] sm:$0xff]
  %v595 = vld [vmem:[#allocation3 + $0x100] sm:$0xff]
  %v596 = vld [vmem:[#allocation3 + $0x108] sm:$0xff]
  %v597 = vld [vmem:[#allocation3 + $0x110] sm:$0xff]
  %v598 = vld [vmem:[#allocation3 + $0x118] sm:$0xff]
  %vm599 = vcmask 588800
  %v601 = vsel %vm599, %v562, 0
  %603 = vmatprep.subr.mxu0 0.0
  %604 = vmatpush1.msra.mxu0 0.0
  %605 = vmatprep.subr.mxu0 0.0
  %606 = vmatpush1.msra.mxu0 0.0
  %607 = vmatprep.subr.mxu0 0.0
  %608 = vmatpush1.msra.mxu0 0.0
  %609 = vmatprep.subr.mxu0 0.0
  %610 = vmatpush1.msra.mxu0 0.0
  %611 = vmatprep.subr.mxu0 0.0
  %612 = vmatpush1.msra.mxu0 0.0
  %613 = vmatprep.subr.mxu0 0.0
  %614 = vmatpush1.msra.mxu0 0.0
  %615 = vmatprep.subr.mxu0 0.0
  %616 = vmatpush1.msra.mxu0 0.0
  %617 = vmatprep.subr.mxu0 %v596
  %618 = vmatpush1.msra.mxu0 %v595
  %619 = vmatprep.subr.mxu0 %v592
  %620 = vmatpush1.msra.mxu0 %v591
  %621 = vmatprep.subr.mxu0 %v588
  %622 = vmatpush1.msra.mxu0 %v587
  %623 = vmatprep.subr.mxu0 %v584
  %624 = vmatpush1.msra.mxu0 %v583
  %625 = vmatprep.subr.mxu0 %v580
  %626 = vmatpush1.msra.mxu0 %v579
  %627 = vmatprep.subr.mxu0 %v576
  %628 = vmatpush1.msra.mxu0 %v575
  %629 = vmatprep.subr.mxu0 %v572
  %630 = vmatpush1.msra.mxu0 %v571
  %631 = vmatprep.subr.mxu0 %v568
  %632 = vmatpush1.msra.mxu0 %v567
  %633 = vmatprep.subr.mxu0 %v564
  %634 = vmatpush1.msra.mxu0 %v563
  %635 = vmatprep.subr.mxu0 0.0
  %636 = vmatpush2.msra.mxu0 0.0
  %637 = vmatprep.subr.mxu0 0.0
  %638 = vmatpush2.msra.mxu0 0.0
  %639 = vmatprep.subr.mxu0 0.0
  %640 = vmatpush2.msra.mxu0 0.0
  %641 = vmatprep.subr.mxu0 0.0
  %642 = vmatpush2.msra.mxu0 0.0
  %643 = vmatprep.subr.mxu0 0.0
  %644 = vmatpush2.msra.mxu0 0.0
  %645 = vmatprep.subr.mxu0 0.0
  %646 = vmatpush2.msra.mxu0 0.0
  %647 = vmatprep.subr.mxu0 0.0
  %648 = vmatpush2.msra.mxu0 0.0
  %649 = vmatprep.subr.mxu0 0.0
  %650 = vmatpush2.msra.mxu0 0.0
  %651 = vmatprep.subr.mxu0 0.0
  %652 = vmatpush2.msra.mxu0 0.0
  %653 = vmatprep.subr.mxu0 0.0
  %654 = vmatpush2.msra.mxu0 0.0
  %655 = vmatprep.subr.mxu0 0.0
  %656 = vmatpush2.msra.mxu0 0.0
  %657 = vmatprep.subr.mxu0 0.0
  %658 = vmatpush2.msra.mxu0 0.0
  %659 = vmatprep.subr.mxu0 0.0
  %660 = vmatpush2.msra.mxu0 0.0
  %661 = vmatprep.subr.mxu0 0.0
  %662 = vmatpush2.msra.mxu0 0.0
  %663 = vmatprep.subr.mxu0 0.0
  %664 = vmatpush2.msra.mxu0 0.0
  %665 = vmatprep.subr.mxu0 0.0
  %666 = vmatpush2.msra.mxu0 0.0
  %667 = vmatprep.mubr.f32.mxu0 0.0
  %668 = vmatmul.mubr.f32.gmra.mxu0 %v601
  %v669 = vpop.f32.mrf.mxu0
  %v670 = vadd.f32 0.0, %v669
  %v671 = vpop.f32.mrf.mxu0
  %v672 = vadd.f32 0.0, %v671
  %673 = vdwg.mxu0
  %674 = vmatprep.subr.mxu0 0.0
  %675 = vmatpush1.msra.mxu0 0.0
  %676 = vmatprep.subr.mxu0 0.0
  %677 = vmatpush1.msra.mxu0 0.0
  %678 = vmatprep.subr.mxu0 0.0
  %679 = vmatpush1.msra.mxu0 0.0
  %680 = vmatprep.subr.mxu0 0.0
  %681 = vmatpush1.msra.mxu0 0.0
  %682 = vmatprep.subr.mxu0 0.0
  %683 = vmatpush1.msra.mxu0 0.0
  %684 = vmatprep.subr.mxu0 0.0
  %685 = vmatpush1.msra.mxu0 0.0
  %686 = vmatprep.subr.mxu0 0.0
  %687 = vmatpush1.msra.mxu0 0.0
  %688 = vmatprep.subr.mxu0 %v598
  %689 = vmatpush1.msra.mxu0 %v597
  %690 = vmatprep.subr.mxu0 %v594
  %691 = vmatpush1.msra.mxu0 %v593
  %692 = vmatprep.subr.mxu0 %v590
  %693 = vmatpush1.msra.mxu0 %v589
  %694 = vmatprep.subr.mxu0 %v586
  %695 = vmatpush1.msra.mxu0 %v585
  %696 = vmatprep.subr.mxu0 %v582
  %697 = vmatpush1.msra.mxu0 %v581
  %698 = vmatprep.subr.mxu0 %v578
  %699 = vmatpush1.msra.mxu0 %v577
  %700 = vmatprep.subr.mxu0 %v574
  %701 = vmatpush1.msra.mxu0 %v573
  %702 = vmatprep.subr.mxu0 %v570
  %703 = vmatpush1.msra.mxu0 %v569
  %704 = vmatprep.subr.mxu0 %v566
  %705 = vmatpush1.msra.mxu0 %v565
  %706 = vmatprep.subr.mxu0 0.0
  %707 = vmatpush2.msra.mxu0 0.0
  %708 = vmatprep.subr.mxu0 0.0
  %709 = vmatpush2.msra.mxu0 0.0
  %710 = vmatprep.subr.mxu0 0.0
  %711 = vmatpush2.msra.mxu0 0.0
  %712 = vmatprep.subr.mxu0 0.0
  %713 = vmatpush2.msra.mxu0 0.0
  %714 = vmatprep.subr.mxu0 0.0
  %715 = vmatpush2.msra.mxu0 0.0
  %716 = vmatprep.subr.mxu0 0.0
  %717 = vmatpush2.msra.mxu0 0.0
  %718 = vmatprep.subr.mxu0 0.0
  %719 = vmatpush2.msra.mxu0 0.0
  %720 = vmatprep.subr.mxu0 0.0
  %721 = vmatpush2.msra.mxu0 0.0
  %722 = vmatprep.subr.mxu0 0.0
  %723 = vmatpush2.msra.mxu0 0.0
  %724 = vmatprep.subr.mxu0 0.0
  %725 = vmatpush2.msra.mxu0 0.0
  %726 = vmatprep.subr.mxu0 0.0
  %727 = vmatpush2.msra.mxu0 0.0
  %728 = vmatprep.subr.mxu0 0.0
  %729 = vmatpush2.msra.mxu0 0.0
  %730 = vmatprep.subr.mxu0 0.0
  %731 = vmatpush2.msra.mxu0 0.0
  %732 = vmatprep.subr.mxu0 0.0
  %733 = vmatpush2.msra.mxu0 0.0
  %734 = vmatprep.subr.mxu0 0.0
  %735 = vmatpush2.msra.mxu0 0.0
  %736 = vmatprep.subr.mxu0 0.0
  %737 = vmatpush2.msra.mxu0 0.0
  %738 = vmatprep.mubr.f32.mxu0 0.0
  %739 = vmatmul.mubr.f32.gmra.mxu0 %v601
  %v740 = vpop.f32.mrf.mxu0
  %v741 = vadd.f32 0.0, %v740
  %v742 = vpop.f32.mrf.mxu0
  %v743 = vadd.f32 0.0, %v742
  %744 = vdwg.mxu0
  %v745 = vadd.f32 %v670, %v672
  %v746 = vadd.f32 %v745, %v741
  %v747 = vadd.f32 %v746, %v743
  %748 = vadd.xlane.f32.xlu0 %v747
  %v749 = vpop.xlane.xlu0 %748
  %v750 = vmul.f32 %v749, 0.001953125
  %v751 = vsub.f32 %v670, %v750
  %v752 = vsub.f32 %v672, %v750
  %v753 = vsub.f32 %v741, %v750
  %v754 = vsub.f32 %v743, %v750
  %v755 = vmul.f32 %v751, %v751
  %v756 = vmul.f32 %v752, %v752
  %v757 = vmul.f32 %v753, %v753
  %v758 = vmul.f32 %v754, %v754
  %v759 = vadd.f32 %v755, %v756
  %v760 = vadd.f32 %v759, %v757
  %v761 = vadd.f32 %v760, %v758
  %762 = vadd.xlane.f32.xlu0 %v761
  %v763 = vpop.xlane.xlu0 %762
  %v764 = vmul.f32 %v763, 0.001953125
  %v765 = vld [vmem:[%s7] sm:$0xff]
  %v766 = vadd.f32 %v764, 1e-05
  %v767 = vrsqrt.pop %v766
  %v768 = vmul.f32 %v765, %v767
  %770 = vset.pattern.permute.xlu0 0
  %771 = vperm.xlu0 %770, %v768
  %v772 = vpop.permute.xlu0 %771
  %v774 = vmul.f32 %v751, %v772
  %v775 = vmul.f32 %v752, %v772
  %v776 = vmul.f32 %v753, %v772
  %v777 = vmul.f32 %v754, %v772
  %v778 = vld [vmem:[%s8] sm:$0xff]
  %780 = vset.pattern.permute.xlu0 0
  %781 = vperm.xlu0 %780, %v778
  %v782 = vpop.permute.xlu0 %781
  %v784 = vadd.f32 %v774, %v782
  %v785 = vadd.f32 %v775, %v782
  %v786 = vadd.f32 %v776, %v782
  %v787 = vadd.f32 %v777, %v782
  %v788 = vmax.f32 %v784, 0.0
  %v789 = vmax.f32 %v785, 0.0
  %v790 = vmax.f32 %v786, 0.0
  %v791 = vmax.f32 %v787, 0.0
  %792 = vrot.lane.b32.xlu0 %v788, 17
  %v793 = vpop.permute.xlu0 %792
  %794 = vrot.lane.b32.xlu0 %v789, 17
  %v795 = vpop.permute.xlu0 %794
  %796 = vrot.lane.b32.xlu0 %v790, 17
  %v797 = vpop.permute.xlu0 %796
  %798 = vrot.lane.b32.xlu0 %v791, 17
  %v799 = vpop.permute.xlu0 %798
  %v800 = vsel %vm270, %v797, %v799
  %v801 = vsel %vm270, %v795, %v797
  %v802 = vsel %vm270, %v793, %v795
  %v803 = vsel %vm270, %v799, %v793
  %v804 = vmul.f32 %v803, %v278
  %v805 = vmul.f32 %v802, %v282
  %v806 = vmul.f32 %v801, %v286
  %v807 = vmul.f32 %v800, %v290
  %808 = vst [vmem:[#allocation3] sm:$0xff] %v804
  %809 = vst [vmem:[#allocation3 + $0x8] sm:$0xff] %v805
  %810 = vst [vmem:[#allocation3 + $0x10] sm:$0xff] %v806
  %811 = vst [vmem:[#allocation3 + $0x18] sm:$0xff] %v807
  %812 = vrot.lane.b32.xlu0 %v788, 16
  %v813 = vpop.permute.xlu0 %812
  %814 = vrot.lane.b32.xlu0 %v789, 16
  %v815 = vpop.permute.xlu0 %814
  %816 = vrot.lane.b32.xlu0 %v790, 16
  %v817 = vpop.permute.xlu0 %816
  %818 = vrot.lane.b32.xlu0 %v791, 16
  %v819 = vpop.permute.xlu0 %818
  %v820 = vsel %vm307, %v817, %v819
  %v821 = vsel %vm307, %v815, %v817
  %v822 = vsel %vm307, %v813, %v815
  %v823 = vsel %vm307, %v819, %v813
  %v824 = vmul.f32 %v823, %v315
  %v825 = vmul.f32 %v822, %v319
  %v826 = vmul.f32 %v821, %v323
  %v827 = vmul.f32 %v820, %v327
  %828 = vst [vmem:[#allocation3 + $0x20] sm:$0xff] %v824
  %829 = vst [vmem:[#allocation3 + $0x28] sm:$0xff] %v825
  %830 = vst [vmem:[#allocation3 + $0x30] sm:$0xff] %v826
  %831 = vst [vmem:[#allocation3 + $0x38] sm:$0xff] %v827
  %832 = vrot.lane.b32.xlu0 %v788, 15
  %v833 = vpop.permute.xlu0 %832
  %834 = vrot.lane.b32.xlu0 %v789, 15
  %v835 = vpop.permute.xlu0 %834
  %836 = vrot.lane.b32.xlu0 %v790, 15
  %v837 = vpop.permute.xlu0 %836
  %838 = vrot.lane.b32.xlu0 %v791, 15
  %v839 = vpop.permute.xlu0 %838
  %v840 = vsel %vm344, %v837, %v839
  %v841 = vsel %vm344, %v835, %v837
  %v842 = vsel %vm344, %v833, %v835
  %v843 = vsel %vm344, %v839, %v833
  %v844 = vmul.f32 %v843, %v352
  %v845 = vmul.f32 %v842, %v356
  %v846 = vmul.f32 %v841, %v360
  %v847 = vmul.f32 %v840, %v364
  %848 = vst [vmem:[#allocation3 + $0x40] sm:$0xff] %v844
  %849 = vst [vmem:[#allocation3 + $0x48] sm:$0xff] %v845
  %850 = vst [vmem:[#allocation3 + $0x50] sm:$0xff] %v846
  %851 = vst [vmem:[#allocation3 + $0x58] sm:$0xff] %v847
  %852 = vrot.lane.b32.xlu0 %v788, 1
  %v853 = vpop.permute.xlu0 %852
  %854 = vrot.lane.b32.xlu0 %v789, 1
  %v855 = vpop.permute.xlu0 %854
  %856 = vrot.lane.b32.xlu0 %v790, 1
  %v857 = vpop.permute.xlu0 %856
  %858 = vrot.lane.b32.xlu0 %v791, 1
  %v859 = vpop.permute.xlu0 %858
  %v860 = vsel %vm381, %v857, %v859
  %v861 = vsel %vm381, %v855, %v857
  %v862 = vsel %vm381, %v853, %v855
  %v863 = vsel %vm381, %v859, %v853
  %v864 = vmul.f32 %v863, %v389
  %v865 = vmul.f32 %v862, %v393
  %v866 = vmul.f32 %v861, %v397
  %v867 = vmul.f32 %v860, %v401
  %868 = vst [vmem:[#allocation3 + $0x60] sm:$0xff] %v864
  %869 = vst [vmem:[#allocation3 + $0x68] sm:$0xff] %v865
  %870 = vst [vmem:[#allocation3 + $0x70] sm:$0xff] %v866
  %871 = vst [vmem:[#allocation3 + $0x78] sm:$0xff] %v867
  %872 = vst [vmem:[#allocation3 + $0x80] sm:$0xff] %v788
  %873 = vst [vmem:[#allocation3 + $0x88] sm:$0xff] %v789
  %874 = vst [vmem:[#allocation3 + $0x90] sm:$0xff] %v790
  %875 = vst [vmem:[#allocation3 + $0x98] sm:$0xff] %v791
  %876 = vrot.lane.b32.xlu0 %v788, 127
  %v877 = vpop.permute.xlu0 %876
  %878 = vrot.lane.b32.xlu0 %v789, 127
  %v879 = vpop.permute.xlu0 %878
  %880 = vrot.lane.b32.xlu0 %v790, 127
  %v881 = vpop.permute.xlu0 %880
  %882 = vrot.lane.b32.xlu0 %v791, 127
  %v883 = vpop.permute.xlu0 %882
  %v884 = vsel %vm422, %v881, %v883
  %v885 = vsel %vm422, %v879, %v881
  %v886 = vsel %vm422, %v877, %v879
  %v887 = vsel %vm422, %v883, %v877
  %v888 = vmul.f32 %v886, %v430
  %v889 = vmul.f32 %v885, %v434
  %v890 = vmul.f32 %v884, %v438
  %v891 = vmul.f32 %v887, %v442
  %892 = vst [vmem:[#allocation3 + $0xa0] sm:$0xff] %v888
  %893 = vst [vmem:[#allocation3 + $0xa8] sm:$0xff] %v889
  %894 = vst [vmem:[#allocation3 + $0xb0] sm:$0xff] %v890
  %895 = vst [vmem:[#allocation3 + $0xb8] sm:$0xff] %v891
  %896 = vrot.lane.b32.xlu0 %v788, 113
  %v897 = vpop.permute.xlu0 %896
  %898 = vrot.lane.b32.xlu0 %v789, 113
  %v899 = vpop.permute.xlu0 %898
  %900 = vrot.lane.b32.xlu0 %v790, 113
  %v901 = vpop.permute.xlu0 %900
  %902 = vrot.lane.b32.xlu0 %v791, 113
  %v903 = vpop.permute.xlu0 %902
  %v904 = vsel %vm459, %v901, %v903
  %v905 = vsel %vm459, %v899, %v901
  %v906 = vsel %vm459, %v897, %v899
  %v907 = vsel %vm459, %v903, %v897
  %v908 = vmul.f32 %v906, %v467
  %v909 = vmul.f32 %v905, %v471
  %v910 = vmul.f32 %v904, %v475
  %v911 = vmul.f32 %v907, %v479
  %912 = vst [vmem:[#allocation3 + $0xc0] sm:$0xff] %v908
  %913 = vst [vmem:[#allocation3 + $0xc8] sm:$0xff] %v909
  %914 = vst [vmem:[#allocation3 + $0xd0] sm:$0xff] %v910
  %915 = vst [vmem:[#allocation3 + $0xd8] sm:$0xff] %v911
  %916 = vrot.lane.b32.xlu0 %v788, 112
  %v917 = vpop.permute.xlu0 %916
  %918 = vrot.lane.b32.xlu0 %v789, 112
  %v919 = vpop.permute.xlu0 %918
  %920 = vrot.lane.b32.xlu0 %v790, 112
  %v921 = vpop.permute.xlu0 %920
  %922 = vrot.lane.b32.xlu0 %v791, 112
  %v923 = vpop.permute.xlu0 %922
  %v924 = vsel %vm496, %v921, %v923
  %v925 = vsel %vm496, %v919, %v921
  %v926 = vsel %vm496, %v917, %v919
  %v927 = vsel %vm496, %v923, %v917
  %v928 = vmul.f32 %v926, %v504
  %v929 = vmul.f32 %v925, %v508
  %v930 = vmul.f32 %v924, %v512
  %v931 = vmul.f32 %v927, %v516
  %932 = vst [vmem:[#allocation3 + $0xe0] sm:$0xff] %v928
  %933 = vst [vmem:[#allocation3 + $0xe8] sm:$0xff] %v929
  %934 = vst [vmem:[#allocation3 + $0xf0] sm:$0xff] %v930
  %935 = vst [vmem:[#allocation3 + $0xf8] sm:$0xff] %v931
  %936 = vrot.lane.b32.xlu0 %v788, 111
  %v937 = vpop.permute.xlu0 %936
  %938 = vrot.lane.b32.xlu0 %v789, 111
  %v939 = vpop.permute.xlu0 %938
  %940 = vrot.lane.b32.xlu0 %v790, 111
  %v941 = vpop.permute.xlu0 %940
  %942 = vrot.lane.b32.xlu0 %v791, 111
  %v943 = vpop.permute.xlu0 %942
  %v944 = vsel %vm533, %v941, %v943
  %v945 = vsel %vm533, %v939, %v941
  %v946 = vsel %vm533, %v937, %v939
  %v947 = vsel %vm533, %v943, %v937
  %v948 = vmul.f32 %v946, %v541
  %v949 = vmul.f32 %v945, %v545
  %v950 = vmul.f32 %v944, %v549
  %v951 = vmul.f32 %v947, %v553
  %952 = vst [vmem:[#allocation3 + $0x100] sm:$0xff] %v948
  %953 = vst [vmem:[#allocation3 + $0x108] sm:$0xff] %v949
  %954 = vst [vmem:[#allocation3 + $0x110] sm:$0xff] %v950
  %955 = vst [vmem:[#allocation3 + $0x118] sm:$0xff] %v951
  %v956 = vld [vmem:[%s9] sm:$0xff]
  %v957 = vld [vmem:[#allocation3] sm:$0xff]
  %v958 = vld [vmem:[#allocation3 + $0x8] sm:$0xff]
  %v959 = vld [vmem:[#allocation3 + $0x10] sm:$0xff]
  %v960 = vld [vmem:[#allocation3 + $0x18] sm:$0xff]
  %v961 = vld [vmem:[#allocation3 + $0x20] sm:$0xff]
  %v962 = vld [vmem:[#allocation3 + $0x28] sm:$0xff]
  %v963 = vld [vmem:[#allocation3 + $0x30] sm:$0xff]
  %v964 = vld [vmem:[#allocation3 + $0x38] sm:$0xff]
  %v965 = vld [vmem:[#allocation3 + $0x40] sm:$0xff]
  %v966 = vld [vmem:[#allocation3 + $0x48] sm:$0xff]
  %v967 = vld [vmem:[#allocation3 + $0x50] sm:$0xff]
  %v968 = vld [vmem:[#allocation3 + $0x58] sm:$0xff]
  %v969 = vld [vmem:[#allocation3 + $0x60] sm:$0xff]
  %v970 = vld [vmem:[#allocation3 + $0x68] sm:$0xff]
  %v971 = vld [vmem:[#allocation3 + $0x70] sm:$0xff]
  %v972 = vld [vmem:[#allocation3 + $0x78] sm:$0xff]
  %v973 = vld [vmem:[#allocation3 + $0x80] sm:$0xff]
  %v974 = vld [vmem:[#allocation3 + $0x88] sm:$0xff]
  %v975 = vld [vmem:[#allocation3 + $0x90] sm:$0xff]
  %v976 = vld [vmem:[#allocation3 + $0x98] sm:$0xff]
  %v977 = vld [vmem:[#allocation3 + $0xa0] sm:$0xff]
  %v978 = vld [vmem:[#allocation3 + $0xa8] sm:$0xff]
  %v979 = vld [vmem:[#allocation3 + $0xb0] sm:$0xff]
  %v980 = vld [vmem:[#allocation3 + $0xb8] sm:$0xff]
  %v981 = vld [vmem:[#allocation3 + $0xc0] sm:$0xff]
  %v982 = vld [vmem:[#allocation3 + $0xc8] sm:$0xff]
  %v983 = vld [vmem:[#allocation3 + $0xd0] sm:$0xff]
  %v984 = vld [vmem:[#allocation3 + $0xd8] sm:$0xff]
  %v985 = vld [vmem:[#allocation3 + $0xe0] sm:$0xff]
  %v986 = vld [vmem:[#allocation3 + $0xe8] sm:$0xff]
  %v987 = vld [vmem:[#allocation3 + $0xf0] sm:$0xff]
  %v988 = vld [vmem:[#allocation3 + $0xf8] sm:$0xff]
  %v989 = vld [vmem:[#allocation3 + $0x100] sm:$0xff]
  %v990 = vld [vmem:[#allocation3 + $0x108] sm:$0xff]
  %v991 = vld [vmem:[#allocation3 + $0x110] sm:$0xff]
  %v992 = vld [vmem:[#allocation3 + $0x118] sm:$0xff]
  %v994 = vsel %vm599, %v956, 0
  %996 = vmatprep.subr.mxu0 0.0
  %997 = vmatpush1.msra.mxu0 0.0
  %998 = vmatprep.subr.mxu0 0.0
  %999 = vmatpush1.msra.mxu0 0.0
  %1000 = vmatprep.subr.mxu0 0.0
  %1001 = vmatpush1.msra.mxu0 0.0
  %1002 = vmatprep.subr.mxu0 0.0
  %1003 = vmatpush1.msra.mxu0 0.0
  %1004 = vmatprep.subr.mxu0 0.0
  %1005 = vmatpush1.msra.mxu0 0.0
  %1006 = vmatprep.subr.mxu0 0.0
  %1007 = vmatpush1.msra.mxu0 0.0
  %1008 = vmatprep.subr.mxu0 0.0
  %1009 = vmatpush1.msra.mxu0 0.0
  %1010 = vmatprep.subr.mxu0 %v990
  %1011 = vmatpush1.msra.mxu0 %v989
  %1012 = vmatprep.subr.mxu0 %v986
  %1013 = vmatpush1.msra.mxu0 %v985
  %1014 = vmatprep.subr.mxu0 %v982
  %1015 = vmatpush1.msra.mxu0 %v981
  %1016 = vmatprep.subr.mxu0 %v978
  %1017 = vmatpush1.msra.mxu0 %v977
  %1018 = vmatprep.subr.mxu0 %v974
  %1019 = vmatpush1.msra.mxu0 %v973
  %1020 = vmatprep.subr.mxu0 %v970
  %1021 = vmatpush1.msra.mxu0 %v969
  %1022 = vmatprep.subr.mxu0 %v966
  %1023 = vmatpush1.msra.mxu0 %v965
  %1024 = vmatprep.subr.mxu0 %v962
  %1025 = vmatpush1.msra.mxu0 %v961
  %1026 = vmatprep.subr.mxu0 %v958
  %1027 = vmatpush1.msra.mxu0 %v957
  %1028 = vmatprep.subr.mxu0 0.0
  %1029 = vmatpush2.msra.mxu0 0.0
  %1030 = vmatprep.subr.mxu0 0.0
  %1031 = vmatpush2.msra.mxu0 0.0
  %1032 = vmatprep.subr.mxu0 0.0
  %1033 = vmatpush2.msra.mxu0 0.0
  %1034 = vmatprep.subr.mxu0 0.0
  %1035 = vmatpush2.msra.mxu0 0.0
  %1036 = vmatprep.subr.mxu0 0.0
  %1037 = vmatpush2.msra.mxu0 0.0
  %1038 = vmatprep.subr.mxu0 0.0
  %1039 = vmatpush2.msra.mxu0 0.0
  %1040 = vmatprep.subr.mxu0 0.0
  %1041 = vmatpush2.msra.mxu0 0.0
  %1042 = vmatprep.subr.mxu0 0.0
  %1043 = vmatpush2.msra.mxu0 0.0
  %1044 = vmatprep.subr.mxu0 0.0
  %1045 = vmatpush2.msra.mxu0 0.0
  %1046 = vmatprep.subr.mxu0 0.0
  %1047 = vmatpush2.msra.mxu0 0.0
  %1048 = vmatprep.subr.mxu0 0.0
  %1049 = vmatpush2.msra.mxu0 0.0
  %1050 = vmatprep.subr.mxu0 0.0
  %1051 = vmatpush2.msra.mxu0 0.0
  %1052 = vmatprep.subr.mxu0 0.0
  %1053 = vmatpush2.msra.mxu0 0.0
  %1054 = vmatprep.subr.mxu0 0.0
  %1055 = vmatpush2.msra.mxu0 0.0
  %1056 = vmatprep.subr.mxu0 0.0
  %1057 = vmatpush2.msra.mxu0 0.0
  %1058 = vmatprep.subr.mxu0 0.0
  %1059 = vmatpush2.msra.mxu0 0.0
  %1060 = vmatprep.mubr.f32.mxu0 0.0
  %1061 = vmatmul.mubr.f32.gmra.mxu0 %v994
  %v1062 = vpop.f32.mrf.mxu0
  %v1063 = vadd.f32 0.0, %v1062
  %v1064 = vpop.f32.mrf.mxu0
  %v1065 = vadd.f32 0.0, %v1064
  %1066 = vdwg.mxu0
  %1067 = vmatprep.subr.mxu0 0.0
  %1068 = vmatpush1.msra.mxu0 0.0
  %1069 = vmatprep.subr.mxu0 0.0
  %1070 = vmatpush1.msra.mxu0 0.0
  %1071 = vmatprep.subr.mxu0 0.0
  %1072 = vmatpush1.msra.mxu0 0.0
  %1073 = vmatprep.subr.mxu0 0.0
  %1074 = vmatpush1.msra.mxu0 0.0
  %1075 = vmatprep.subr.mxu0 0.0
  %1076 = vmatpush1.msra.mxu0 0.0
  %1077 = vmatprep.subr.mxu0 0.0
  %1078 = vmatpush1.msra.mxu0 0.0
  %1079 = vmatprep.subr.mxu0 0.0
  %1080 = vmatpush1.msra.mxu0 0.0
  %1081 = vmatprep.subr.mxu0 %v992
  %1082 = vmatpush1.msra.mxu0 %v991
  %1083 = vmatprep.subr.mxu0 %v988
  %1084 = vmatpush1.msra.mxu0 %v987
  %1085 = vmatprep.subr.mxu0 %v984
  %1086 = vmatpush1.msra.mxu0 %v983
  %1087 = vmatprep.subr.mxu0 %v980
  %1088 = vmatpush1.msra.mxu0 %v979
  %1089 = vmatprep.subr.mxu0 %v976
  %1090 = vmatpush1.msra.mxu0 %v975
  %1091 = vmatprep.subr.mxu0 %v972
  %1092 = vmatpush1.msra.mxu0 %v971
  %1093 = vmatprep.subr.mxu0 %v968
  %1094 = vmatpush1.msra.mxu0 %v967
  %1095 = vmatprep.subr.mxu0 %v964
  %1096 = vmatpush1.msra.mxu0 %v963
  %1097 = vmatprep.subr.mxu0 %v960
  %1098 = vmatpush1.msra.mxu0 %v959
  %1099 = vmatprep.subr.mxu0 0.0
  %1100 = vmatpush2.msra.mxu0 0.0
  %1101 = vmatprep.subr.mxu0 0.0
  %1102 = vmatpush2.msra.mxu0 0.0
  %1103 = vmatprep.subr.mxu0 0.0
  %1104 = vmatpush2.msra.mxu0 0.0
  %1105 = vmatprep.subr.mxu0 0.0
  %1106 = vmatpush2.msra.mxu0 0.0
  %1107 = vmatprep.subr.mxu0 0.0
  %1108 = vmatpush2.msra.mxu0 0.0
  %1109 = vmatprep.subr.mxu0 0.0
  %1110 = vmatpush2.msra.mxu0 0.0
  %1111 = vmatprep.subr.mxu0 0.0
  %1112 = vmatpush2.msra.mxu0 0.0
  %1113 = vmatprep.subr.mxu0 0.0
  %1114 = vmatpush2.msra.mxu0 0.0
  %1115 = vmatprep.subr.mxu0 0.0
  %1116 = vmatpush2.msra.mxu0 0.0
  %1117 = vmatprep.subr.mxu0 0.0
  %1118 = vmatpush2.msra.mxu0 0.0
  %1119 = vmatprep.subr.mxu0 0.0
  %1120 = vmatpush2.msra.mxu0 0.0
  %1121 = vmatprep.subr.mxu0 0.0
  %1122 = vmatpush2.msra.mxu0 0.0
  %1123 = vmatprep.subr.mxu0 0.0
  %1124 = vmatpush2.msra.mxu0 0.0
  %1125 = vmatprep.subr.mxu0 0.0
  %1126 = vmatpush2.msra.mxu0 0.0
  %1127 = vmatprep.subr.mxu0 0.0
  %1128 = vmatpush2.msra.mxu0 0.0
  %1129 = vmatprep.subr.mxu0 0.0
  %1130 = vmatpush2.msra.mxu0 0.0
  %1131 = vmatprep.mubr.f32.mxu0 0.0
  %1132 = vmatmul.mubr.f32.gmra.mxu0 %v994
  %v1133 = vpop.f32.mrf.mxu0
  %v1134 = vadd.f32 0.0, %v1133
  %v1135 = vpop.f32.mrf.mxu0
  %v1136 = vadd.f32 0.0, %v1135
  %1137 = vdwg.mxu0
  %v1138 = vadd.f32 %v1063, %v1065
  %v1139 = vadd.f32 %v1138, %v1134
  %v1140 = vadd.f32 %v1139, %v1136
  %1141 = vadd.xlane.f32.xlu0 %v1140
  %v1142 = vpop.xlane.xlu0 %1141
  %v1143 = vmul.f32 %v1142, 0.001953125
  %v1144 = vsub.f32 %v1063, %v1143
  %v1145 = vsub.f32 %v1065, %v1143
  %v1146 = vsub.f32 %v1134, %v1143
  %v1147 = vsub.f32 %v1136, %v1143
  %v1148 = vmul.f32 %v1144, %v1144
  %v1149 = vmul.f32 %v1145, %v1145
  %v1150 = vmul.f32 %v1146, %v1146
  %v1151 = vmul.f32 %v1147, %v1147
  %v1152 = vadd.f32 %v1148, %v1149
  %v1153 = vadd.f32 %v1152, %v1150
  %v1154 = vadd.f32 %v1153, %v1151
  %1155 = vadd.xlane.f32.xlu0 %v1154
  %v1156 = vpop.xlane.xlu0 %1155
  %v1157 = vmul.f32 %v1156, 0.001953125
  %v1158 = vld [vmem:[%s10] sm:$0xff]
  %v1159 = vadd.f32 %v1157, 1e-05
  %v1160 = vrsqrt.pop %v1159
  %v1161 = vmul.f32 %v1158, %v1160
  %1163 = vset.pattern.permute.xlu0 0
  %1164 = vperm.xlu0 %1163, %v1161
  %v1165 = vpop.permute.xlu0 %1164
  %v1167 = vmul.f32 %v1144, %v1165
  %v1168 = vmul.f32 %v1145, %v1165
  %v1169 = vmul.f32 %v1146, %v1165
  %v1170 = vmul.f32 %v1147, %v1165
  %v1171 = vld [vmem:[%s11] sm:$0xff]
  %1173 = vset.pattern.permute.xlu0 0
  %1174 = vperm.xlu0 %1173, %v1171
  %v1175 = vpop.permute.xlu0 %1174
  %v1177 = vadd.f32 %v1167, %v1175
  %v1178 = vadd.f32 %v1168, %v1175
  %v1179 = vadd.f32 %v1169, %v1175
  %v1180 = vadd.f32 %v1170, %v1175
  %v1181 = vmax.f32 %v1177, 0.0
  %v1182 = vmax.f32 %v1178, 0.0
  %v1183 = vmax.f32 %v1179, 0.0
  %v1184 = vmax.f32 %v1180, 0.0
  %1185 = vst [vmem:[%s12] sm:$0xff] %v1181
  %1186 = vst [vmem:[%s12 + $0x8] sm:$0xff] %v1182
  %1187 = vst [vmem:[%s12 + $0x10] sm:$0xff] %v1183
  %1188 = vst [vmem:[%s12 + $0x18] sm:$0xff] %v1184
  // Predicated region
  $region50: #{forward.1} parent=0 // pred_check
    _
  $region51: #{forward.1} parent=0 // pred_check_branch
    %1190 = sbr.rel (0) target = $region53
  $region52: #{forward.1} parent=0 // pred_region
    _
  $region53: #{forward.1} parent=0 // pred_fallthru
    _
  // Predicated region
  $region54: #{forward.1} parent=0 // pred_check
    _
  $region55: #{forward.1} parent=0 // pred_check_branch
    %1192 = sbr.rel (0) target = $region57
  $region56: #{forward.1} parent=0 // pred_region
    _
  $region57: #{forward.1} parent=0 // pred_fallthru
    _

</llo_original>
